<compile_context>
chip_gen: v7x
topology: tpu7x:2x2x1
jax: 0.10.0
libtpu: 0.0.40
codegen_flags: <defaults>
</compile_context>

<pallas_src>
import functools

import numpy as np
import jax
import jax.numpy as jnp
from jax import lax
from jax.experimental import pallas as pl
from jax.experimental.pallas import tpu as pltpu

# scaled-down VGG dimensions (consistent with the synthetic module weights)
H, W, C_IN = 16, 16, 4
C1, C2 = 8, 16
H2, W2 = H // 2, W // 2           # after pool1: 8 x 8
H3, W3 = H2 // 2, W2 // 2         # after pool2: 4 x 4
FC1, FC2, N_CLS = 32, 32, 10
FEAT = H3 * W3 * C2               # 256
LANE = 128                        # W*C1 == W2*C2 == 128 (lane-dense conv outputs)


# ----------------------------------------------------------------------------
# Fused kernel: one grid step == SP samples through the whole network
# ----------------------------------------------------------------------------
def _fused_vgg_kernel(
    x_ref,                                    # (SP, 16, 64)   lane-packed NHWC
    m1a_ref, m1b_ref, m1c_ref, b1_ref,        # 3 x (64, 128), (1, 128)
    m2a_ref, m2b_ref, m2c_ref, b2_ref,        # 3 x (64, 128), (1, 128)
    w1_ref, bf1_ref,                          # (256, 32), (1, 32)
    w2_ref, bf2_ref,                          # (32, 32),  (1, 32)
    w3_ref, bf3_ref,                          # (32, 128), (1, 128)  class-padded
    o_ref,                                    # (1, SP, 128)
    pad1_ref,                                 # (SP, 18, 64) VMEM: height-halo scratch
    pad2_ref,                                 # (SP, 10, 64) VMEM: height-halo scratch
    *, SP,
):
    f32 = jnp.float32

    def conv3x3(pad_ref, hd, wc_in, ma_ref, mb_ref, mc_ref, b_ref):
        # SAME 3x3 conv as three row-banded matmuls (one per kernel row).
        # Width zero-padding is already folded into the banded weights;
        # height padding comes from the two zero halo rows of pad_ref.
        top = pad_ref[:, 0:hd, :].reshape(SP * hd, wc_in)
        mid = pad_ref[:, 1:hd + 1, :].reshape(SP * hd, wc_in)
        bot = pad_ref[:, 2:hd + 2, :].reshape(SP * hd, wc_in)
        acc = (jnp.dot(top, ma_ref[...], preferred_element_type=f32)
               + jnp.dot(mid, mb_ref[...], preferred_element_type=f32)
               + jnp.dot(bot, mc_ref[...], preferred_element_type=f32))
        return jnp.maximum(acc + b_ref[...], 0.0)          # (SP*hd, wd*c_out)

    def pool2x2(y, hd, wd, c):
        # 2x2 max-pool on the lane-packed (s, h, w*c) layout: pair the two w's
        # inside each 2*c lane group, then the two h's in the sublane dim.
        y = y.reshape(SP, hd, wd // 2, 2 * c)
        y = jnp.maximum(y[..., :c], y[..., c:])             # w-pool
        y = y.reshape(SP, hd // 2, 2, (wd // 2) * c)
        return jnp.maximum(y[:, :, 0, :], y[:, :, 1, :])    # h-pool: (SP, hd/2, wd/2*c)

    # ---- stage 1: conv1 (4->8) + ReLU + 2x2 max-pool -------------------------
    zrow1 = jnp.zeros((SP, 1, W * C_IN), f32)
    pad1_ref[:, 0:1, :] = zrow1                  # zero top halo row
    pad1_ref[:, H + 1:H + 2, :] = zrow1          # zero bottom halo row
    pad1_ref[:, 1:H + 1, :] = x_ref[...]
    h1 = conv3x3(pad1_ref, H, W * C_IN, m1a_ref, m1b_ref, m1c_ref, b1_ref)  # (SP*16, 128)
    p1 = pool2x2(h1, H, W, C1)                                              # (SP, 8, 64)

    # ---- stage 2: conv2 (8->16) + ReLU + 2x2 max-pool ------------------------
    zrow2 = jnp.zeros((SP, 1, W2 * C1), f32)
    pad2_ref[:, 0:1, :] = zrow2
    pad2_ref[:, H2 + 1:H2 + 2, :] = zrow2
    pad2_ref[:, 1:H2 + 1, :] = p1
    h2 = conv3x3(pad2_ref, H2, W2 * C1, m2a_ref, m2b_ref, m2c_ref, b2_ref)  # (SP*8, 128)
    p2 = pool2x2(h2, H2, W2, C2)                                            # (SP, 4, 64)

    # ---- classifier: fc1+ReLU, [Dropout->id], fc2+ReLU, [Dropout->id], fc3 ----
    feat = p2.reshape(SP, FEAT)                  # (SP, 256) in (h, w, c) order
    y = jnp.maximum(jnp.dot(feat, w1_ref[...], preferred_element_type=f32)
                    + bf1_ref[...], 0.0)
    y = jnp.maximum(jnp.dot(y, w2_ref[...], preferred_element_type=f32)
                    + bf2_ref[...], 0.0)
    z = jnp.dot(y, w3_ref[...], preferred_element_type=f32) + bf3_ref[...]  # (SP, 128)
    o_ref[...] = z.reshape(1, SP, LANE).astype(o_ref.dtype)


# ----------------------------------------------------------------------------
# Host wrapper: SP samples per (parallel) grid step == regrouped torch.chunk
# ----------------------------------------------------------------------------
def dist_vgg_forward(kparams, x_nchw, samples_per_step=None):
    B = x_nchw.shape[0]
    if samples_per_step is None:
        # Fat grid steps amortize per-step pipeline overhead; keep >=2 steps when
        # B>=2 so both v7x TensorCores get work; cap so double-buffered input +
        # scratch + intermediates stay far inside v7x's 64 MiB VMEM.
        samples_per_step = min(max(1, B // 2), 128)
    SP = samples_per_step
    n_steps = -(-B // SP)
    Bp = n_steps * SP

    # One whole-batch layout op: NCHW -> NHWC -> lane-packed (B, 16, W*C_IN).
    x = jnp.transpose(x_nchw.astype(jnp.float32), (0, 2, 3, 1)).reshape(B, H, W * C_IN)
    if Bp != B:
        # Ragged grouping: pad the batch, slice the result (no cross-sample coupling).
        x = jnp.pad(x, ((0, Bp - B), (0, 0), (0, 0)))

    def cspec(shape):  # constant (weight) array, resident in VMEM across the grid
        ndim = len(shape)
        return pl.BlockSpec(shape, lambda i: (0,) * ndim)

    out = pl.pallas_call(
        functools.partial(_fused_vgg_kernel, SP=SP),
        out_shape=jax.ShapeDtypeStruct((n_steps, SP, LANE), jnp.float32),
        grid=(n_steps,),
        in_specs=[
            pl.BlockSpec((SP, H, W * C_IN), lambda i: (i, 0, 0)),
            cspec((W * C_IN, LANE)), cspec((W * C_IN, LANE)), cspec((W * C_IN, LANE)),
            cspec((1, LANE)),
            cspec((W2 * C1, LANE)), cspec((W2 * C1, LANE)), cspec((W2 * C1, LANE)),
            cspec((1, LANE)),
            cspec((FEAT, FC1)), cspec((1, FC1)),
            cspec((FC1, FC2)), cspec((1, FC2)),
            cspec((FC2, LANE)), cspec((1, LANE)),
        ],
        out_specs=pl.BlockSpec((1, SP, LANE), lambda i: (i, 0, 0)),
        scratch_shapes=[
            pltpu.VMEM((SP, H + 2, W * C_IN), jnp.float32),
            pltpu.VMEM((SP, H2 + 2, W2 * C1), jnp.float32),
        ],
        compiler_params=pltpu.CompilerParams(
            dimension_semantics=("parallel",),       # samples are independent
            vmem_limit_bytes=32 * 1024 * 1024),
    )(x,
      kparams["m1a"], kparams["m1b"], kparams["m1c"], kparams["b1"],
      kparams["m2a"], kparams["m2b"], kparams["m2c"], kparams["b2"],
      kparams["w1"], kparams["bf1"], kparams["w2"], kparams["bf2"],
      kparams["w3"], kparams["bf3"])

    return out.reshape(Bp, LANE)[:B, :N_CLS]


# ----------------------------------------------------------------------------
# Synthetic parameters (torch-style layout) + one-time kernel-layout prep
# ----------------------------------------------------------------------------
def init_params(key):
    def wn(k, shape, fan_in):
        return jax.random.normal(k, shape, jnp.float32) * (1.0 / jnp.sqrt(fan_in))

    ks = jax.random.split(key, 10)
    return {
        "conv1_w": wn(ks[0], (3, 3, C_IN, C1), 3 * 3 * C_IN),
        "conv1_b": wn(ks[1], (C1,), C1),
        "conv2_w": wn(ks[2], (3, 3, C1, C2), 3 * 3 * C1),
        "conv2_b": wn(ks[3], (C2,), C2),
        # classifier: Linear(256->32)+ReLU+[Drop], Linear(32->32)+ReLU+[Drop], Linear(32->10)
        "fc1_w": wn(ks[4], (C2 * H3 * W3, FC1), C2 * H3 * W3),   # rows in NCHW-flatten order
        "fc1_b": wn(ks[5], (FC1,), FC1),
        "fc2_w": wn(ks[6], (FC1, FC2), FC1),
        "fc2_b": wn(ks[7], (FC2,), FC2),
        "fc3_w": wn(ks[8], (FC2, N_CLS), FC2),
        "fc3_b": wn(ks[9], (N_CLS,), N_CLS),
    }


def _band_matrices(w_hwio, width):
    """Row-banded weight matrices M_kh (width*C_in, width*C_out) so that a SAME
    3x3 conv row is `padded_row[h+kh] @ M_kh` summed over kh (width zero-padding
    folded into the band).  Host-side, one-time, numerically exact."""
    w = np.asarray(w_hwio, dtype=np.float32)
    c_in, c_out = w.shape[2], w.shape[3]
    mats = []
    for kh in range(3):
        m = np.zeros((width * c_in, width * c_out), np.float32)
        for kw in range(3):
            for wo in range(width):
                wi = wo + kw - 1
                if 0 <= wi < width:
                    m[wi * c_in:(wi + 1) * c_in, wo * c_out:(wo + 1) * c_out] = w[kh, kw]
        mats.append(jnp.asarray(m))
    return mats


def prepare_params(p):
    """One-time host-side re-layout of the torch-style weights for the kernel."""
    m1a, m1b, m1c = _band_matrices(p["conv1_w"], W)
    m2a, m2b, m2c = _band_matrices(p["conv2_w"], W2)
    # fc1 rows are in NCHW-flatten order (c*16 + h*4 + w); re-order to the
    # kernel's lane-packed (h*64 + w*16 + c) flatten order (identical numerics).
    fc1 = np.asarray(p["fc1_w"], np.float32)
    w1p = fc1.reshape(C2, H3, W3, FC1).transpose(1, 2, 0, 3).reshape(FEAT, FC1)
    # fc3 padded to 128 output lanes so the final store is lane-dense.
    w3p = np.zeros((FC2, LANE), np.float32)
    w3p[:, :N_CLS] = np.asarray(p["fc3_w"], np.float32)
    b3p = np.zeros((1, LANE), np.float32)
    b3p[0, :N_CLS] = np.asarray(p["fc3_b"], np.float32)
    return {
        "m1a": m1a, "m1b": m1b, "m1c": m1c,
        "b1": jnp.asarray(np.tile(np.asarray(p["conv1_b"], np.float32), W).reshape(1, LANE)),
        "m2a": m2a, "m2b": m2b, "m2c": m2c,
        "b2": jnp.asarray(np.tile(np.asarray(p["conv2_b"], np.float32), W2).reshape(1, LANE)),
        "w1": jnp.asarray(w1p), "bf1": p["fc1_b"].reshape(1, FC1),
        "w2": p["fc2_w"], "bf2": p["fc2_b"].reshape(1, FC2),
        "w3": jnp.asarray(w3p), "bf3": jnp.asarray(b3p),
    }


# ----------------------------------------------------------------------------
# Pure-JAX reference for correctness checking
# ----------------------------------------------------------------------------
def reference_forward(params, x_nchw):
    x = jnp.transpose(x_nchw, (0, 2, 3, 1))

    def conv(x, w, b):
        y = lax.conv_general_dilated(
            x, w, window_strides=(1, 1), padding="SAME",
            dimension_numbers=("NHWC", "HWIO", "NHWC"))
        return jnp.maximum(y + b, 0.0)

    def pool(x):
        return lax.reduce_window(x, -jnp.inf, lax.max,
                                 (1, 2, 2, 1), (1, 2, 2, 1), "VALID")

    x = pool(conv(x, params["conv1_w"], params["conv1_b"]))
    x = pool(conv(x, params["conv2_w"], params["conv2_b"]))
    x = jnp.transpose(x, (0, 3, 1, 2)).reshape(x.shape[0], -1)   # NCHW flatten
    x = jnp.maximum(x @ params["fc1_w"] + params["fc1_b"], 0.0)
    x = jnp.maximum(x @ params["fc2_w"] + params["fc2_b"], 0.0)
    return x @ params["fc3_w"] + params["fc3_b"]


if __name__ == "__main__":
    key = jax.random.PRNGKey(0)
    kp, kx = jax.random.split(key)
    params = init_params(kp)
    kparams = prepare_params(params)     # one-time weight re-layout

    # small shapes consistent with the module: batch=2, channels=4, spatial=16
    x = jax.random.normal(kx, (2, C_IN, H, W), jnp.float32)      # NCHW like PyTorch

    out = jax.block_until_ready(dist_vgg_forward(kparams, x))

    ref = reference_forward(params, x)
    assert out.shape == (2, N_CLS), out.shape
    assert jnp.allclose(out, ref, rtol=2e-4, atol=2e-4), "mismatch vs reference"

    print("KERNEL_OK")
</pallas_src>

<mosaic_0001>
module attributes {stable_mosaic.version = 11 : i64} {
  func.func @_fused_vgg_kernel(%arg0: i32, %arg1: memref<1x16x64xf32, #tpu.memory_space<vmem>>, %arg2: memref<64x128xf32, #tpu.memory_space<vmem>>, %arg3: memref<64x128xf32, #tpu.memory_space<vmem>>, %arg4: memref<64x128xf32, #tpu.memory_space<vmem>>, %arg5: memref<1x128xf32, #tpu.memory_space<vmem>>, %arg6: memref<64x128xf32, #tpu.memory_space<vmem>>, %arg7: memref<64x128xf32, #tpu.memory_space<vmem>>, %arg8: memref<64x128xf32, #tpu.memory_space<vmem>>, %arg9: memref<1x128xf32, #tpu.memory_space<vmem>>, %arg10: memref<256x32xf32, #tpu.memory_space<vmem>>, %arg11: memref<1x32xf32, #tpu.memory_space<vmem>>, %arg12: memref<32x32xf32, #tpu.memory_space<vmem>>, %arg13: memref<1x32xf32, #tpu.memory_space<vmem>>, %arg14: memref<32x128xf32, #tpu.memory_space<vmem>>, %arg15: memref<1x128xf32, #tpu.memory_space<vmem>>, %arg16: memref<1x1x128xf32, #tpu.memory_space<vmem>>, %arg17: memref<1x18x64xf32, #tpu.memory_space<vmem>>, %arg18: memref<1x10x64xf32, #tpu.memory_space<vmem>>) attributes {dimension_semantics = [#tpu.dimension_semantics<parallel>], iteration_bounds = array<i64: 2>, scalar_prefetch = 0 : i64, scratch_operands = 2 : i64, tpu.core_type = #tpu.core_type<tc>, window_params = [{transform_indices = @transform_0, window_bounds = array<i64: 1, 16, 64>}, {pipeline_mode = #tpu.pipeline_mode<synchronous>, transform_indices = @transform_1, window_bounds = array<i64: 64, 128>}, {pipeline_mode = #tpu.pipeline_mode<synchronous>, transform_indices = @transform_2, window_bounds = array<i64: 64, 128>}, {pipeline_mode = #tpu.pipeline_mode<synchronous>, transform_indices = @transform_3, window_bounds = array<i64: 64, 128>}, {pipeline_mode = #tpu.pipeline_mode<synchronous>, transform_indices = @transform_4, window_bounds = array<i64: 1, 128>}, {pipeline_mode = #tpu.pipeline_mode<synchronous>, transform_indices = @transform_5, window_bounds = array<i64: 64, 128>}, {pipeline_mode = #tpu.pipeline_mode<synchronous>, transform_indices = @transform_6, window_bounds = array<i64: 64, 128>}, {pipeline_mode = #tpu.pipeline_mode<synchronous>, transform_indices = @transform_7, window_bounds = array<i64: 64, 128>}, {pipeline_mode = #tpu.pipeline_mode<synchronous>, transform_indices = @transform_8, window_bounds = array<i64: 1, 128>}, {pipeline_mode = #tpu.pipeline_mode<synchronous>, transform_indices = @transform_9, window_bounds = array<i64: 256, 32>}, {pipeline_mode = #tpu.pipeline_mode<synchronous>, transform_indices = @transform_10, window_bounds = array<i64: 1, 32>}, {pipeline_mode = #tpu.pipeline_mode<synchronous>, transform_indices = @transform_11, window_bounds = array<i64: 32, 32>}, {pipeline_mode = #tpu.pipeline_mode<synchronous>, transform_indices = @transform_12, window_bounds = array<i64: 1, 32>}, {pipeline_mode = #tpu.pipeline_mode<synchronous>, transform_indices = @transform_13, window_bounds = array<i64: 32, 128>}, {pipeline_mode = #tpu.pipeline_mode<synchronous>, transform_indices = @transform_14, window_bounds = array<i64: 1, 128>}, {transform_indices = @transform_15, window_bounds = array<i64: 1, 1, 128>}]} {
    %cst = arith.constant 0.000000e+00 : f32
    %0 = vector.broadcast %cst : f32 to vector<1x1x64xf32>
    %c0 = arith.constant 0 : index
    %c0_0 = arith.constant 0 : index
    %c0_1 = arith.constant 0 : index
    %1 = vector.load %arg17[%c0, %c0_0, %c0_1] : memref<1x18x64xf32, #tpu.memory_space<vmem>>, vector<1x1x64xf32>
    tpu.vector_store %arg17[%c0, %c0_0, %c0_1], %0 {strides = array<i32>} : memref<1x18x64xf32, #tpu.memory_space<vmem>>, vector<1x1x64xf32>,
    %c0_2 = arith.constant 0 : index
    %c17 = arith.constant 17 : index
    %c0_3 = arith.constant 0 : index
    %2 = vector.load %arg17[%c0_2, %c17, %c0_3] : memref<1x18x64xf32, #tpu.memory_space<vmem>>, vector<1x1x64xf32>
    tpu.vector_store %arg17[%c0_2, %c17, %c0_3], %0 {strides = array<i32>} : memref<1x18x64xf32, #tpu.memory_space<vmem>>, vector<1x1x64xf32>,
    %c0_4 = arith.constant 0 : index
    %c0_5 = arith.constant 0 : index
    %c0_6 = arith.constant 0 : index
    %3 = vector.load %arg1[%c0_4, %c0_5, %c0_6] : memref<1x16x64xf32, #tpu.memory_space<vmem>>, vector<1x16x64xf32>
    %c0_7 = arith.constant 0 : index
    %c1 = arith.constant 1 : index
    %c0_8 = arith.constant 0 : index
    %4 = vector.load %arg17[%c0_7, %c1, %c0_8] : memref<1x18x64xf32, #tpu.memory_space<vmem>>, vector<1x16x64xf32>
    tpu.vector_store %arg17[%c0_7, %c1, %c0_8], %3 {strides = array<i32>} : memref<1x18x64xf32, #tpu.memory_space<vmem>>, vector<1x16x64xf32>,
    %c0_9 = arith.constant 0 : index
    %c0_10 = arith.constant 0 : index
    %c0_11 = arith.constant 0 : index
    %5 = vector.load %arg17[%c0_9, %c0_10, %c0_11] : memref<1x18x64xf32, #tpu.memory_space<vmem>>, vector<1x16x64xf32>
    %6 = vector.shape_cast %5 : vector<1x16x64xf32> to vector<16x64xf32>
    %c0_12 = arith.constant 0 : index
    %c1_13 = arith.constant 1 : index
    %c0_14 = arith.constant 0 : index
    %7 = vector.load %arg17[%c0_12, %c1_13, %c0_14] : memref<1x18x64xf32, #tpu.memory_space<vmem>>, vector<1x16x64xf32>
    %8 = vector.shape_cast %7 : vector<1x16x64xf32> to vector<16x64xf32>
    %c0_15 = arith.constant 0 : index
    %c2 = arith.constant 2 : index
    %c0_16 = arith.constant 0 : index
    %9 = vector.load %arg17[%c0_15, %c2, %c0_16] : memref<1x18x64xf32, #tpu.memory_space<vmem>>, vector<1x16x64xf32>
    %10 = vector.shape_cast %9 : vector<1x16x64xf32> to vector<16x64xf32>
    %c0_17 = arith.constant 0 : index
    %c0_18 = arith.constant 0 : index
    %11 = vector.load %arg2[%c0_17, %c0_18] : memref<64x128xf32, #tpu.memory_space<vmem>>, vector<64x128xf32>
    %cst_19 = arith.constant dense<0.000000e+00> : vector<16x128xf32>
    %12 = tpu.matmul %6, %11, %cst_19 {dimension_numbers = #tpu.dot_dimension_numbers<[1], [0], [0], [1], [0, 0, 1, 1], [], []>} : vector<16x64xf32>, vector<64x128xf32>, vector<16x128xf32> -> vector<16x128xf32>
    %c0_20 = arith.constant 0 : index
    %c0_21 = arith.constant 0 : index
    %13 = vector.load %arg3[%c0_20, %c0_21] : memref<64x128xf32, #tpu.memory_space<vmem>>, vector<64x128xf32>
    %cst_22 = arith.constant dense<0.000000e+00> : vector<16x128xf32>
    %14 = tpu.matmul %8, %13, %cst_22 {dimension_numbers = #tpu.dot_dimension_numbers<[1], [0], [0], [1], [0, 0, 1, 1], [], []>} : vector<16x64xf32>, vector<64x128xf32>, vector<16x128xf32> -> vector<16x128xf32>
    %15 = arith.addf %12, %14 : vector<16x128xf32>
    %c0_23 = arith.constant 0 : index
    %c0_24 = arith.constant 0 : index
    %16 = vector.load %arg4[%c0_23, %c0_24] : memref<64x128xf32, #tpu.memory_space<vmem>>, vector<64x128xf32>
    %cst_25 = arith.constant dense<0.000000e+00> : vector<16x128xf32>
    %17 = tpu.matmul %10, %16, %cst_25 {dimension_numbers = #tpu.dot_dimension_numbers<[1], [0], [0], [1], [0, 0, 1, 1], [], []>} : vector<16x64xf32>, vector<64x128xf32>, vector<16x128xf32> -> vector<16x128xf32>
    %18 = arith.addf %15, %17 : vector<16x128xf32>
    %c0_26 = arith.constant 0 : index
    %c0_27 = arith.constant 0 : index
    %19 = vector.load %arg5[%c0_26, %c0_27] : memref<1x128xf32, #tpu.memory_space<vmem>>, vector<1x128xf32>
    %20 = vector.broadcast %19 : vector<1x128xf32> to vector<16x128xf32>
    %21 = arith.addf %18, %20 : vector<16x128xf32>
    %cst_28 = arith.constant 0.000000e+00 : f32
    %22 = vector.broadcast %cst_28 : f32 to vector<16x128xf32>
    %23 = arith.maximumf %21, %22 : vector<16x128xf32>
    %24 = vector.shape_cast %23 : vector<16x128xf32> to vector<1x16x8x16xf32>
    %25 = vector.extract_strided_slice %24 {offsets = [0, 0, 0, 0], sizes = [1, 16, 8, 8], strides = [1, 1, 1, 1]} : vector<1x16x8x16xf32> to vector<1x16x8x8xf32>
    %26 = vector.extract_strided_slice %24 {offsets = [0, 0, 0, 8], sizes = [1, 16, 8, 8], strides = [1, 1, 1, 1]} : vector<1x16x8x16xf32> to vector<1x16x8x8xf32>
    %27 = arith.maximumf %25, %26 : vector<1x16x8x8xf32>
    %28 = vector.shape_cast %27 : vector<1x16x8x8xf32> to vector<1x8x2x64xf32>
    %29 = vector.extract_strided_slice %28 {offsets = [0, 0, 0, 0], sizes = [1, 8, 1, 64], strides = [1, 1, 1, 1]} : vector<1x8x2x64xf32> to vector<1x8x1x64xf32>
    %30 = vector.shape_cast %29 : vector<1x8x1x64xf32> to vector<1x8x64xf32>
    %31 = vector.extract_strided_slice %28 {offsets = [0, 0, 1, 0], sizes = [1, 8, 1, 64], strides = [1, 1, 1, 1]} : vector<1x8x2x64xf32> to vector<1x8x1x64xf32>
    %32 = vector.shape_cast %31 : vector<1x8x1x64xf32> to vector<1x8x64xf32>
    %33 = arith.maximumf %30, %32 : vector<1x8x64xf32>
    %cst_29 = arith.constant 0.000000e+00 : f32
    %34 = vector.broadcast %cst_29 : f32 to vector<1x1x64xf32>
    %c0_30 = arith.constant 0 : index
    %c0_31 = arith.constant 0 : index
    %c0_32 = arith.constant 0 : index
    %35 = vector.load %arg18[%c0_30, %c0_31, %c0_32] : memref<1x10x64xf32, #tpu.memory_space<vmem>>, vector<1x1x64xf32>
    tpu.vector_store %arg18[%c0_30, %c0_31, %c0_32], %34 {strides = array<i32>} : memref<1x10x64xf32, #tpu.memory_space<vmem>>, vector<1x1x64xf32>,
    %c0_33 = arith.constant 0 : index
    %c9 = arith.constant 9 : index
    %c0_34 = arith.constant 0 : index
    %36 = vector.load %arg18[%c0_33, %c9, %c0_34] : memref<1x10x64xf32, #tpu.memory_space<vmem>>, vector<1x1x64xf32>
    tpu.vector_store %arg18[%c0_33, %c9, %c0_34], %34 {strides = array<i32>} : memref<1x10x64xf32, #tpu.memory_space<vmem>>, vector<1x1x64xf32>,
    %c0_35 = arith.constant 0 : index
    %c1_36 = arith.constant 1 : index
    %c0_37 = arith.constant 0 : index
    %37 = vector.load %arg18[%c0_35, %c1_36, %c0_37] : memref<1x10x64xf32, #tpu.memory_space<vmem>>, vector<1x8x64xf32>
    tpu.vector_store %arg18[%c0_35, %c1_36, %c0_37], %33 {strides = array<i32>} : memref<1x10x64xf32, #tpu.memory_space<vmem>>, vector<1x8x64xf32>,
    %c0_38 = arith.constant 0 : index
    %c0_39 = arith.constant 0 : index
    %c0_40 = arith.constant 0 : index
    %38 = vector.load %arg18[%c0_38, %c0_39, %c0_40] : memref<1x10x64xf32, #tpu.memory_space<vmem>>, vector<1x8x64xf32>
    %39 = vector.shape_cast %38 : vector<1x8x64xf32> to vector<8x64xf32>
    %c0_41 = arith.constant 0 : index
    %c1_42 = arith.constant 1 : index
    %c0_43 = arith.constant 0 : index
    %40 = vector.load %arg18[%c0_41, %c1_42, %c0_43] : memref<1x10x64xf32, #tpu.memory_space<vmem>>, vector<1x8x64xf32>
    %41 = vector.shape_cast %40 : vector<1x8x64xf32> to vector<8x64xf32>
    %c0_44 = arith.constant 0 : index
    %c2_45 = arith.constant 2 : index
    %c0_46 = arith.constant 0 : index
    %42 = vector.load %arg18[%c0_44, %c2_45, %c0_46] : memref<1x10x64xf32, #tpu.memory_space<vmem>>, vector<1x8x64xf32>
    %43 = vector.shape_cast %42 : vector<1x8x64xf32> to vector<8x64xf32>
    %c0_47 = arith.constant 0 : index
    %c0_48 = arith.constant 0 : index
    %44 = vector.load %arg6[%c0_47, %c0_48] : memref<64x128xf32, #tpu.memory_space<vmem>>, vector<64x128xf32>
    %cst_49 = arith.constant dense<0.000000e+00> : vector<8x128xf32>
    %45 = tpu.matmul %39, %44, %cst_49 {dimension_numbers = #tpu.dot_dimension_numbers<[1], [0], [0], [1], [0, 0, 1, 1], [], []>} : vector<8x64xf32>, vector<64x128xf32>, vector<8x128xf32> -> vector<8x128xf32>
    %c0_50 = arith.constant 0 : index
    %c0_51 = arith.constant 0 : index
    %46 = vector.load %arg7[%c0_50, %c0_51] : memref<64x128xf32, #tpu.memory_space<vmem>>, vector<64x128xf32>
    %cst_52 = arith.constant dense<0.000000e+00> : vector<8x128xf32>
    %47 = tpu.matmul %41, %46, %cst_52 {dimension_numbers = #tpu.dot_dimension_numbers<[1], [0], [0], [1], [0, 0, 1, 1], [], []>} : vector<8x64xf32>, vector<64x128xf32>, vector<8x128xf32> -> vector<8x128xf32>
    %48 = arith.addf %45, %47 : vector<8x128xf32>
    %c0_53 = arith.constant 0 : index
    %c0_54 = arith.constant 0 : index
    %49 = vector.load %arg8[%c0_53, %c0_54] : memref<64x128xf32, #tpu.memory_space<vmem>>, vector<64x128xf32>
    %cst_55 = arith.constant dense<0.000000e+00> : vector<8x128xf32>
    %50 = tpu.matmul %43, %49, %cst_55 {dimension_numbers = #tpu.dot_dimension_numbers<[1], [0], [0], [1], [0, 0, 1, 1], [], []>} : vector<8x64xf32>, vector<64x128xf32>, vector<8x128xf32> -> vector<8x128xf32>
    %51 = arith.addf %48, %50 : vector<8x128xf32>
    %c0_56 = arith.constant 0 : index
    %c0_57 = arith.constant 0 : index
    %52 = vector.load %arg9[%c0_56, %c0_57] : memref<1x128xf32, #tpu.memory_space<vmem>>, vector<1x128xf32>
    %53 = vector.broadcast %52 : vector<1x128xf32> to vector<8x128xf32>
    %54 = arith.addf %51, %53 : vector<8x128xf32>
    %cst_58 = arith.constant 0.000000e+00 : f32
    %55 = vector.broadcast %cst_58 : f32 to vector<8x128xf32>
    %56 = arith.maximumf %54, %55 : vector<8x128xf32>
    %57 = vector.shape_cast %56 : vector<8x128xf32> to vector<1x8x4x32xf32>
    %58 = vector.extract_strided_slice %57 {offsets = [0, 0, 0, 0], sizes = [1, 8, 4, 16], strides = [1, 1, 1, 1]} : vector<1x8x4x32xf32> to vector<1x8x4x16xf32>
    %59 = vector.extract_strided_slice %57 {offsets = [0, 0, 0, 16], sizes = [1, 8, 4, 16], strides = [1, 1, 1, 1]} : vector<1x8x4x32xf32> to vector<1x8x4x16xf32>
    %60 = arith.maximumf %58, %59 : vector<1x8x4x16xf32>
    %61 = vector.shape_cast %60 : vector<1x8x4x16xf32> to vector<1x4x2x64xf32>
    %62 = vector.extract_strided_slice %61 {offsets = [0, 0, 0, 0], sizes = [1, 4, 1, 64], strides = [1, 1, 1, 1]} : vector<1x4x2x64xf32> to vector<1x4x1x64xf32>
    %63 = vector.shape_cast %62 : vector<1x4x1x64xf32> to vector<1x4x64xf32>
    %64 = vector.extract_strided_slice %61 {offsets = [0, 0, 1, 0], sizes = [1, 4, 1, 64], strides = [1, 1, 1, 1]} : vector<1x4x2x64xf32> to vector<1x4x1x64xf32>
    %65 = vector.shape_cast %64 : vector<1x4x1x64xf32> to vector<1x4x64xf32>
    %66 = arith.maximumf %63, %65 : vector<1x4x64xf32>
    %67 = vector.shape_cast %66 : vector<1x4x64xf32> to vector<1x256xf32>
    %c0_59 = arith.constant 0 : index
    %c0_60 = arith.constant 0 : index
    %68 = vector.load %arg10[%c0_59, %c0_60] : memref<256x32xf32, #tpu.memory_space<vmem>>, vector<256x32xf32>
    %cst_61 = arith.constant dense<0.000000e+00> : vector<1x32xf32>
    %69 = tpu.matmul %67, %68, %cst_61 {dimension_numbers = #tpu.dot_dimension_numbers<[1], [0], [0], [1], [0, 0, 1, 1], [], []>} : vector<1x256xf32>, vector<256x32xf32>, vector<1x32xf32> -> vector<1x32xf32>
    %c0_62 = arith.constant 0 : index
    %c0_63 = arith.constant 0 : index
    %70 = vector.load %arg11[%c0_62, %c0_63] : memref<1x32xf32, #tpu.memory_space<vmem>>, vector<1x32xf32>
    %71 = arith.addf %69, %70 : vector<1x32xf32>
    %cst_64 = arith.constant 0.000000e+00 : f32
    %72 = vector.broadcast %cst_64 : f32 to vector<1x32xf32>
    %73 = arith.maximumf %71, %72 : vector<1x32xf32>
    %c0_65 = arith.constant 0 : index
    %c0_66 = arith.constant 0 : index
    %74 = vector.load %arg12[%c0_65, %c0_66] : memref<32x32xf32, #tpu.memory_space<vmem>>, vector<32x32xf32>
    %cst_67 = arith.constant dense<0.000000e+00> : vector<1x32xf32>
    %75 = tpu.matmul %73, %74, %cst_67 {dimension_numbers = #tpu.dot_dimension_numbers<[1], [0], [0], [1], [0, 0, 1, 1], [], []>} : vector<1x32xf32>, vector<32x32xf32>, vector<1x32xf32> -> vector<1x32xf32>
    %c0_68 = arith.constant 0 : index
    %c0_69 = arith.constant 0 : index
    %76 = vector.load %arg13[%c0_68, %c0_69] : memref<1x32xf32, #tpu.memory_space<vmem>>, vector<1x32xf32>
    %77 = arith.addf %75, %76 : vector<1x32xf32>
    %cst_70 = arith.constant 0.000000e+00 : f32
    %78 = vector.broadcast %cst_70 : f32 to vector<1x32xf32>
    %79 = arith.maximumf %77, %78 : vector<1x32xf32>
    %c0_71 = arith.constant 0 : index
    %c0_72 = arith.constant 0 : index
    %80 = vector.load %arg14[%c0_71, %c0_72] : memref<32x128xf32, #tpu.memory_space<vmem>>, vector<32x128xf32>
    %cst_73 = arith.constant dense<0.000000e+00> : vector<1x128xf32>
    %81 = tpu.matmul %79, %80, %cst_73 {dimension_numbers = #tpu.dot_dimension_numbers<[1], [0], [0], [1], [0, 0, 1, 1], [], []>} : vector<1x32xf32>, vector<32x128xf32>, vector<1x128xf32> -> vector<1x128xf32>
    %c0_74 = arith.constant 0 : index
    %c0_75 = arith.constant 0 : index
    %82 = vector.load %arg15[%c0_74, %c0_75] : memref<1x128xf32, #tpu.memory_space<vmem>>, vector<1x128xf32>
    %83 = arith.addf %81, %82 : vector<1x128xf32>
    %84 = vector.shape_cast %83 : vector<1x128xf32> to vector<1x1x128xf32>
    %c0_76 = arith.constant 0 : index
    %c0_77 = arith.constant 0 : index
    %c0_78 = arith.constant 0 : index
    %85 = vector.load %arg16[%c0_76, %c0_77, %c0_78] : memref<1x1x128xf32, #tpu.memory_space<vmem>>, vector<1x1x128xf32>
    tpu.vector_store %arg16[%c0_76, %c0_77, %c0_78], %84 {strides = array<i32>} : memref<1x1x128xf32, #tpu.memory_space<vmem>>, vector<1x1x128xf32>,
    return
  }
  func.func @transform_0(%arg0: i32) -> (i32, i32, i32) {
    %c0_i32 = arith.constant 0 : i32
    %c0_i32_0 = arith.constant 0 : i32
    %c0_i32_1 = arith.constant 0 : i32
    return %arg0, %c0_i32, %c0_i32_0 : i32, i32, i32
  }
  func.func @transform_1(%arg0: i32) -> (i32, i32) {
    %c0_i32 = arith.constant 0 : i32
    %c0_i32_0 = arith.constant 0 : i32
    %c0_i32_1 = arith.constant 0 : i32
    return %c0_i32, %c0_i32_0 : i32, i32
  }
  func.func @transform_2(%arg0: i32) -> (i32, i32) {
    %c0_i32 = arith.constant 0 : i32
    %c0_i32_0 = arith.constant 0 : i32
    %c0_i32_1 = arith.constant 0 : i32
    return %c0_i32, %c0_i32_0 : i32, i32
  }
  func.func @transform_3(%arg0: i32) -> (i32, i32) {
    %c0_i32 = arith.constant 0 : i32
    %c0_i32_0 = arith.constant 0 : i32
    %c0_i32_1 = arith.constant 0 : i32
    return %c0_i32, %c0_i32_0 : i32, i32
  }
  func.func @transform_4(%arg0: i32) -> (i32, i32) {
    %c0_i32 = arith.constant 0 : i32
    %c0_i32_0 = arith.constant 0 : i32
    %c0_i32_1 = arith.constant 0 : i32
    return %c0_i32, %c0_i32_0 : i32, i32
  }
  func.func @transform_5(%arg0: i32) -> (i32, i32) {
    %c0_i32 = arith.constant 0 : i32
    %c0_i32_0 = arith.constant 0 : i32
    %c0_i32_1 = arith.constant 0 : i32
    return %c0_i32, %c0_i32_0 : i32, i32
  }
  func.func @transform_6(%arg0: i32) -> (i32, i32) {
    %c0_i32 = arith.constant 0 : i32
    %c0_i32_0 = arith.constant 0 : i32
    %c0_i32_1 = arith.constant 0 : i32
    return %c0_i32, %c0_i32_0 : i32, i32
  }
  func.func @transform_7(%arg0: i32) -> (i32, i32) {
    %c0_i32 = arith.constant 0 : i32
    %c0_i32_0 = arith.constant 0 : i32
    %c0_i32_1 = arith.constant 0 : i32
    return %c0_i32, %c0_i32_0 : i32, i32
  }
  func.func @transform_8(%arg0: i32) -> (i32, i32) {
    %c0_i32 = arith.constant 0 : i32
    %c0_i32_0 = arith.constant 0 : i32
    %c0_i32_1 = arith.constant 0 : i32
    return %c0_i32, %c0_i32_0 : i32, i32
  }
  func.func @transform_9(%arg0: i32) -> (i32, i32) {
    %c0_i32 = arith.constant 0 : i32
    %c0_i32_0 = arith.constant 0 : i32
    %c0_i32_1 = arith.constant 0 : i32
    return %c0_i32, %c0_i32_0 : i32, i32
  }
  func.func @transform_10(%arg0: i32) -> (i32, i32) {
    %c0_i32 = arith.constant 0 : i32
    %c0_i32_0 = arith.constant 0 : i32
    %c0_i32_1 = arith.constant 0 : i32
    return %c0_i32, %c0_i32_0 : i32, i32
  }
  func.func @transform_11(%arg0: i32) -> (i32, i32) {
    %c0_i32 = arith.constant 0 : i32
    %c0_i32_0 = arith.constant 0 : i32
    %c0_i32_1 = arith.constant 0 : i32
    return %c0_i32, %c0_i32_0 : i32, i32
  }
  func.func @transform_12(%arg0: i32) -> (i32, i32) {
    %c0_i32 = arith.constant 0 : i32
    %c0_i32_0 = arith.constant 0 : i32
    %c0_i32_1 = arith.constant 0 : i32
    return %c0_i32, %c0_i32_0 : i32, i32
  }
  func.func @transform_13(%arg0: i32) -> (i32, i32) {
    %c0_i32 = arith.constant 0 : i32
    %c0_i32_0 = arith.constant 0 : i32
    %c0_i32_1 = arith.constant 0 : i32
    return %c0_i32, %c0_i32_0 : i32, i32
  }
  func.func @transform_14(%arg0: i32) -> (i32, i32) {
    %c0_i32 = arith.constant 0 : i32
    %c0_i32_0 = arith.constant 0 : i32
    %c0_i32_1 = arith.constant 0 : i32
    return %c0_i32, %c0_i32_0 : i32, i32
  }
  func.func @transform_15(%arg0: i32) -> (i32, i32, i32) {
    %c0_i32 = arith.constant 0 : i32
    %c0_i32_0 = arith.constant 0 : i32
    %c0_i32_1 = arith.constant 0 : i32
    return %arg0, %c0_i32, %c0_i32_0 : i32, i32, i32
  }
}

</mosaic_0001>

<llo_original>
// kernel: tpu_custom_call.1
$region0: #{tpu_custom_call.1}
  #allocation0 [shape = 'u32[]', space=smem, size = 0x4, offset = 0x4, fixed_abs, tag = 'smem constant byte address 0x4 - core index']
  #allocation1 [shape = 'u32[144,128]{1,0:T(1,128)}', space=vmem, size = 0x12000, scoped, tag = 'internal scratch']
  #allocation2 [shape = 'f32[1,18,64]{2,1,0:T(8,128)}', space=vmem, size = 0x3000, scoped, tag = 'scratch operand']
  #allocation3 [shape = 'f32[1,10,64]{2,1,0:T(8,128)}', space=vmem, size = 0x2000, scoped, tag = 'scratch operand']
  %s0 = inlined_call_operand.hbm [shape: f32[2,16,64], index: 0, kind: input, shape index: {}]
  %s1 = inlined_call_operand.vmem [shape: f32[64,128], index: 1, kind: input, shape index: {}]
  %s2 = inlined_call_operand.vmem [shape: f32[64,128], index: 2, kind: input, shape index: {}]
  %s3 = inlined_call_operand.vmem [shape: f32[64,128], index: 3, kind: input, shape index: {}]
  %s4 = inlined_call_operand.vmem [shape: f32[1,128], index: 4, kind: input, shape index: {}]
  %s5 = inlined_call_operand.vmem [shape: f32[64,128], index: 5, kind: input, shape index: {}]
  %s6 = inlined_call_operand.vmem [shape: f32[64,128], index: 6, kind: input, shape index: {}]
  %s7 = inlined_call_operand.hbm [shape: f32[64,128], index: 7, kind: input, shape index: {}]
  %s8 = inlined_call_operand.vmem [shape: f32[1,128], index: 8, kind: input, shape index: {}]
  %s9 = inlined_call_operand.vmem [shape: f32[256,32], index: 9, kind: input, shape index: {}]
  %s10 = inlined_call_operand.vmem [shape: f32[1,32], index: 10, kind: input, shape index: {}]
  %s11 = inlined_call_operand.vmem [shape: f32[32,32], index: 11, kind: input, shape index: {}]
  %s12 = inlined_call_operand.vmem [shape: f32[1,32], index: 12, kind: input, shape index: {}]
  %s13 = inlined_call_operand.hbm [shape: f32[32,128], index: 13, kind: input, shape index: {}]
  %s14 = inlined_call_operand.vmem [shape: f32[1,128], index: 14, kind: input, shape index: {}]
  %s15 = inlined_call_operand.hbm [shape: f32[2,1,128], index: 15, kind: output, shape index: {}]
  %s16 = sld [smem:[#allocation0]]
  $region105: #{tpu_custom_call.1} parent=0
    _
  %s18 = ssub.s32 1, %s16
  %s19 = scalar_select 0, %s18, %s16
  $region1: #{tpu_custom_call.1} parent=0
    #allocation4 [shape = 'u8[16384]{0}', space=vmem, size = 0x4000, scoped, tag = 'input window, operand 0']
    #allocation5 [shape = 's32[2]{0}', space=sflag, size = 0x8, scoped, tag = 'scoped memory for tpu_custom_call.1']
    #allocation6 [shape = 's32[2]{0}', space=sflag, size = 0x8, scoped, tag = 'scoped memory for tpu_custom_call.1']
    #allocation7 [shape = 'u8[32768]{0}', space=vmem, size = 0x8000, scoped, tag = 'input window, operand 7, single buffered']
    #allocation8 [shape = 's32[1]{0}', space=sflag, size = 0x4, scoped, tag = 'scoped memory for tpu_custom_call.1']
    #allocation9 [shape = 'u8[16384]{0}', space=vmem, size = 0x4000, scoped, tag = 'input window, operand 13, single buffered']
    #allocation10 [shape = 'u8[1024]{0}', space=vmem, size = 0x400, scoped, tag = 'output window, operand 0']
    %20 = vsyncpa [#allocation5], 0
    %s21 = scalar_lea.sflag [#allocation5], 1
    %22 = vsyncpa %s21, 0
    %23 = vsyncpa [#allocation8], 0
    %24 = vsyncpa [#allocation6], 0
    %s25 = scalar_lea.sflag [#allocation6], 1
    %26 = vsyncpa %s25, 0
    loop: start=0, step=1, limit=4
    $region2: #{tpu_custom_call.1} parent=1 // loop_pre_header
      _
    $region3: #{tpu_custom_call.1} parent=1 // loop_header
      %s28 = sphi 0, %s32
      %p29 = scmp.ge.s32.totalorder %s28, 4
      %s38 = sphi 0, %s40
      %s41 = sphi 0, %s38
      %s42 = sphi 0, %s41
      %s58 = sphi 0, %s42
      %s62 = sphi 0, %s62
      %s64 = sphi 0, %s62
      %s65 = sphi 0, %s64
      %s79 = sphi 0, %s65
      %s83 = sphi 0, %s83
      %s85 = sphi 0, %s83
      %s86 = sphi 0, %s85
      %s100 = sphi 0, %s86
      %s104 = sphi 0, %s104
      %s106 = sphi 0, %s104
      %s107 = sphi 0, %s106
      %s121 = sphi 0, %s107
      %s125 = sphi 0, %s125
      %s127 = sphi 0, %s125
      %s128 = sphi 0, %s127
      %s142 = sphi 0, %s128
      %s146 = sphi 0, %s146
      %s148 = sphi 0, %s146
      %s149 = sphi 0, %s148
      %s163 = sphi 0, %s149
      %s167 = sphi 0, %s167
      %s169 = sphi 0, %s167
      %s170 = sphi 0, %s169
      %s184 = sphi 0, %s170
      %s188 = sphi 0, %s188
      %s190 = sphi 0, %s188
      %s191 = sphi 0, %s190
      %s205 = sphi 0, %s191
      %s209 = sphi 0, %s209
      %s211 = sphi 0, %s209
      %s212 = sphi 0, %s211
      %s226 = sphi 0, %s212
      %s230 = sphi 0, %s230
      %s232 = sphi 0, %s230
      %s233 = sphi 0, %s232
      %s247 = sphi 0, %s233
      %s251 = sphi 0, %s251
      %s253 = sphi 0, %s251
      %s254 = sphi 0, %s253
      %s268 = sphi 0, %s254
      %s272 = sphi 0, %s272
      %s274 = sphi 0, %s272
      %s275 = sphi 0, %s274
      %s289 = sphi 0, %s275
      %s293 = sphi 0, %s293
      %s295 = sphi 0, %s293
      %s296 = sphi 0, %s295
      %s310 = sphi 0, %s296
      %s314 = sphi 0, %s314
      %s316 = sphi 0, %s314
      %s317 = sphi 0, %s316
      %s331 = sphi 0, %s317
      %s335 = sphi 0, %s335
      %s337 = sphi 0, %s335
      %s338 = sphi 0, %s337
      %s352 = sphi 0, %s338
      %s358 = sphi 0, %s360
      %s361 = sphi 0, %s358
      %s362 = sphi 0, %s361
      %s378 = sphi 0, %s362
    $region4: #{tpu_custom_call.1} parent=1 // loop_header_branch
      %31 = sbr.rel (%p29) target = $region8
    $region5: #{tpu_custom_call.1} parent=1 // loop_body
      %s33 = ssub.s32 %s28, 1
      %s34 = ssub.s32 %s28, 2
      %s35 = sadd.s32 %s28, 1
      %s36 = ssub.s32 %s28, %s35
      %p37 = scmp.eq.s32.totalorder %s36, 0
      %s39 = sadd.s32 %s38, 1
      %s40 = scalar_select %p37, %s38, %s39
      %p43 = pneg %p37
      %p44 = scmp.eq.s32.totalorder %s28, 1
      %p45 = por %p43, %p44
      %p46 = scmp.ne.s32.totalorder %s38, %s41
      %p47 = scmp.eq.s32.totalorder %s28, 0
      %p48 = por %p46, %p47
      %p49 = scmp.ne.s32.totalorder %s38, %s41
      %p50 = scmp.eq.s32.totalorder %s33, 1
      %p51 = por %p49, %p50
      %p52 = scmp.ne.s32.totalorder %s41, %s42
      %p53 = scmp.eq.s32.totalorder %s33, 0
      %p54 = por %p52, %p53
      %p55 = scmp.ne.s32.totalorder %s41, %s42
      %p56 = scmp.eq.s32.totalorder %s34, 1
      %p57 = por %p55, %p56
      %p59 = scmp.ne.s32.totalorder %s42, %s58
      %p60 = scmp.eq.s32.totalorder %s34, 0
      %p61 = por %p59, %p60
      %s63 = sadd.s32 %s62, 1
      %p66 = scmp.eq.s32.totalorder %s28, 1
      %p67 = scmp.ne.s32.totalorder %s62, %s64
      %p68 = scmp.eq.s32.totalorder %s28, 0
      %p69 = por %p67, %p68
      %p70 = scmp.ne.s32.totalorder %s62, %s64
      %p71 = scmp.eq.s32.totalorder %s33, 1
      %p72 = por %p70, %p71
      %p73 = scmp.ne.s32.totalorder %s64, %s65
      %p74 = scmp.eq.s32.totalorder %s33, 0
      %p75 = por %p73, %p74
      %p76 = scmp.ne.s32.totalorder %s64, %s65
      %p77 = scmp.eq.s32.totalorder %s34, 1
      %p78 = por %p76, %p77
      %p80 = scmp.ne.s32.totalorder %s65, %s79
      %p81 = scmp.eq.s32.totalorder %s34, 0
      %p82 = por %p80, %p81
      %s84 = sadd.s32 %s83, 1
      %p87 = scmp.eq.s32.totalorder %s28, 1
      %p88 = scmp.ne.s32.totalorder %s83, %s85
      %p89 = scmp.eq.s32.totalorder %s28, 0
      %p90 = por %p88, %p89
      %p91 = scmp.ne.s32.totalorder %s83, %s85
      %p92 = scmp.eq.s32.totalorder %s33, 1
      %p93 = por %p91, %p92
      %p94 = scmp.ne.s32.totalorder %s85, %s86
      %p95 = scmp.eq.s32.totalorder %s33, 0
      %p96 = por %p94, %p95
      %p97 = scmp.ne.s32.totalorder %s85, %s86
      %p98 = scmp.eq.s32.totalorder %s34, 1
      %p99 = por %p97, %p98
      %p101 = scmp.ne.s32.totalorder %s86, %s100
      %p102 = scmp.eq.s32.totalorder %s34, 0
      %p103 = por %p101, %p102
      %s105 = sadd.s32 %s104, 1
      %p108 = scmp.eq.s32.totalorder %s28, 1
      %p109 = scmp.ne.s32.totalorder %s104, %s106
      %p110 = scmp.eq.s32.totalorder %s28, 0
      %p111 = por %p109, %p110
      %p112 = scmp.ne.s32.totalorder %s104, %s106
      %p113 = scmp.eq.s32.totalorder %s33, 1
      %p114 = por %p112, %p113
      %p115 = scmp.ne.s32.totalorder %s106, %s107
      %p116 = scmp.eq.s32.totalorder %s33, 0
      %p117 = por %p115, %p116
      %p118 = scmp.ne.s32.totalorder %s106, %s107
      %p119 = scmp.eq.s32.totalorder %s34, 1
      %p120 = por %p118, %p119
      %p122 = scmp.ne.s32.totalorder %s107, %s121
      %p123 = scmp.eq.s32.totalorder %s34, 0
      %p124 = por %p122, %p123
      %s126 = sadd.s32 %s125, 1
      %p129 = scmp.eq.s32.totalorder %s28, 1
      %p130 = scmp.ne.s32.totalorder %s125, %s127
      %p131 = scmp.eq.s32.totalorder %s28, 0
      %p132 = por %p130, %p131
      %p133 = scmp.ne.s32.totalorder %s125, %s127
      %p134 = scmp.eq.s32.totalorder %s33, 1
      %p135 = por %p133, %p134
      %p136 = scmp.ne.s32.totalorder %s127, %s128
      %p137 = scmp.eq.s32.totalorder %s33, 0
      %p138 = por %p136, %p137
      %p139 = scmp.ne.s32.totalorder %s127, %s128
      %p140 = scmp.eq.s32.totalorder %s34, 1
      %p141 = por %p139, %p140
      %p143 = scmp.ne.s32.totalorder %s128, %s142
      %p144 = scmp.eq.s32.totalorder %s34, 0
      %p145 = por %p143, %p144
      %s147 = sadd.s32 %s146, 1
      %p150 = scmp.eq.s32.totalorder %s28, 1
      %p151 = scmp.ne.s32.totalorder %s146, %s148
      %p152 = scmp.eq.s32.totalorder %s28, 0
      %p153 = por %p151, %p152
      %p154 = scmp.ne.s32.totalorder %s146, %s148
      %p155 = scmp.eq.s32.totalorder %s33, 1
      %p156 = por %p154, %p155
      %p157 = scmp.ne.s32.totalorder %s148, %s149
      %p158 = scmp.eq.s32.totalorder %s33, 0
      %p159 = por %p157, %p158
      %p160 = scmp.ne.s32.totalorder %s148, %s149
      %p161 = scmp.eq.s32.totalorder %s34, 1
      %p162 = por %p160, %p161
      %p164 = scmp.ne.s32.totalorder %s149, %s163
      %p165 = scmp.eq.s32.totalorder %s34, 0
      %p166 = por %p164, %p165
      %s168 = sadd.s32 %s167, 1
      %p171 = scmp.eq.s32.totalorder %s28, 1
      %p172 = scmp.ne.s32.totalorder %s167, %s169
      %p173 = scmp.eq.s32.totalorder %s28, 0
      %p174 = por %p172, %p173
      %p175 = scmp.ne.s32.totalorder %s167, %s169
      %p176 = scmp.eq.s32.totalorder %s33, 1
      %p177 = por %p175, %p176
      %p178 = scmp.ne.s32.totalorder %s169, %s170
      %p179 = scmp.eq.s32.totalorder %s33, 0
      %p180 = por %p178, %p179
      %p181 = scmp.ne.s32.totalorder %s169, %s170
      %p182 = scmp.eq.s32.totalorder %s34, 1
      %p183 = por %p181, %p182
      %p185 = scmp.ne.s32.totalorder %s170, %s184
      %p186 = scmp.eq.s32.totalorder %s34, 0
      %p187 = por %p185, %p186
      %s189 = sadd.s32 %s188, 1
      %p192 = scmp.eq.s32.totalorder %s28, 1
      %p193 = scmp.ne.s32.totalorder %s188, %s190
      %p194 = scmp.eq.s32.totalorder %s28, 0
      %p195 = por %p193, %p194
      %p196 = scmp.ne.s32.totalorder %s188, %s190
      %p197 = scmp.eq.s32.totalorder %s33, 1
      %p198 = por %p196, %p197
      %p199 = scmp.ne.s32.totalorder %s190, %s191
      %p200 = scmp.eq.s32.totalorder %s33, 0
      %p201 = por %p199, %p200
      %p202 = scmp.ne.s32.totalorder %s190, %s191
      %p203 = scmp.eq.s32.totalorder %s34, 1
      %p204 = por %p202, %p203
      %p206 = scmp.ne.s32.totalorder %s191, %s205
      %p207 = scmp.eq.s32.totalorder %s34, 0
      %p208 = por %p206, %p207
      %s210 = sadd.s32 %s209, 1
      %p213 = scmp.eq.s32.totalorder %s28, 1
      %p214 = scmp.ne.s32.totalorder %s209, %s211
      %p215 = scmp.eq.s32.totalorder %s28, 0
      %p216 = por %p214, %p215
      %p217 = scmp.ne.s32.totalorder %s209, %s211
      %p218 = scmp.eq.s32.totalorder %s33, 1
      %p219 = por %p217, %p218
      %p220 = scmp.ne.s32.totalorder %s211, %s212
      %p221 = scmp.eq.s32.totalorder %s33, 0
      %p222 = por %p220, %p221
      %p223 = scmp.ne.s32.totalorder %s211, %s212
      %p224 = scmp.eq.s32.totalorder %s34, 1
      %p225 = por %p223, %p224
      %p227 = scmp.ne.s32.totalorder %s212, %s226
      %p228 = scmp.eq.s32.totalorder %s34, 0
      %p229 = por %p227, %p228
      %s231 = sadd.s32 %s230, 1
      %p234 = scmp.eq.s32.totalorder %s28, 1
      %p235 = scmp.ne.s32.totalorder %s230, %s232
      %p236 = scmp.eq.s32.totalorder %s28, 0
      %p237 = por %p235, %p236
      %p238 = scmp.ne.s32.totalorder %s230, %s232
      %p239 = scmp.eq.s32.totalorder %s33, 1
      %p240 = por %p238, %p239
      %p241 = scmp.ne.s32.totalorder %s232, %s233
      %p242 = scmp.eq.s32.totalorder %s33, 0
      %p243 = por %p241, %p242
      %p244 = scmp.ne.s32.totalorder %s232, %s233
      %p245 = scmp.eq.s32.totalorder %s34, 1
      %p246 = por %p244, %p245
      %p248 = scmp.ne.s32.totalorder %s233, %s247
      %p249 = scmp.eq.s32.totalorder %s34, 0
      %p250 = por %p248, %p249
      %s252 = sadd.s32 %s251, 1
      %p255 = scmp.eq.s32.totalorder %s28, 1
      %p256 = scmp.ne.s32.totalorder %s251, %s253
      %p257 = scmp.eq.s32.totalorder %s28, 0
      %p258 = por %p256, %p257
      %p259 = scmp.ne.s32.totalorder %s251, %s253
      %p260 = scmp.eq.s32.totalorder %s33, 1
      %p261 = por %p259, %p260
      %p262 = scmp.ne.s32.totalorder %s253, %s254
      %p263 = scmp.eq.s32.totalorder %s33, 0
      %p264 = por %p262, %p263
      %p265 = scmp.ne.s32.totalorder %s253, %s254
      %p266 = scmp.eq.s32.totalorder %s34, 1
      %p267 = por %p265, %p266
      %p269 = scmp.ne.s32.totalorder %s254, %s268
      %p270 = scmp.eq.s32.totalorder %s34, 0
      %p271 = por %p269, %p270
      %s273 = sadd.s32 %s272, 1
      %p276 = scmp.eq.s32.totalorder %s28, 1
      %p277 = scmp.ne.s32.totalorder %s272, %s274
      %p278 = scmp.eq.s32.totalorder %s28, 0
      %p279 = por %p277, %p278
      %p280 = scmp.ne.s32.totalorder %s272, %s274
      %p281 = scmp.eq.s32.totalorder %s33, 1
      %p282 = por %p280, %p281
      %p283 = scmp.ne.s32.totalorder %s274, %s275
      %p284 = scmp.eq.s32.totalorder %s33, 0
      %p285 = por %p283, %p284
      %p286 = scmp.ne.s32.totalorder %s274, %s275
      %p287 = scmp.eq.s32.totalorder %s34, 1
      %p288 = por %p286, %p287
      %p290 = scmp.ne.s32.totalorder %s275, %s289
      %p291 = scmp.eq.s32.totalorder %s34, 0
      %p292 = por %p290, %p291
      %s294 = sadd.s32 %s293, 1
      %p297 = scmp.eq.s32.totalorder %s28, 1
      %p298 = scmp.ne.s32.totalorder %s293, %s295
      %p299 = scmp.eq.s32.totalorder %s28, 0
      %p300 = por %p298, %p299
      %p301 = scmp.ne.s32.totalorder %s293, %s295
      %p302 = scmp.eq.s32.totalorder %s33, 1
      %p303 = por %p301, %p302
      %p304 = scmp.ne.s32.totalorder %s295, %s296
      %p305 = scmp.eq.s32.totalorder %s33, 0
      %p306 = por %p304, %p305
      %p307 = scmp.ne.s32.totalorder %s295, %s296
      %p308 = scmp.eq.s32.totalorder %s34, 1
      %p309 = por %p307, %p308
      %p311 = scmp.ne.s32.totalorder %s296, %s310
      %p312 = scmp.eq.s32.totalorder %s34, 0
      %p313 = por %p311, %p312
      %s315 = sadd.s32 %s314, 1
      %p318 = scmp.eq.s32.totalorder %s28, 1
      %p319 = scmp.ne.s32.totalorder %s314, %s316
      %p320 = scmp.eq.s32.totalorder %s28, 0
      %p321 = por %p319, %p320
      %p322 = scmp.ne.s32.totalorder %s314, %s316
      %p323 = scmp.eq.s32.totalorder %s33, 1
      %p324 = por %p322, %p323
      %p325 = scmp.ne.s32.totalorder %s316, %s317
      %p326 = scmp.eq.s32.totalorder %s33, 0
      %p327 = por %p325, %p326
      %p328 = scmp.ne.s32.totalorder %s316, %s317
      %p329 = scmp.eq.s32.totalorder %s34, 1
      %p330 = por %p328, %p329
      %p332 = scmp.ne.s32.totalorder %s317, %s331
      %p333 = scmp.eq.s32.totalorder %s34, 0
      %p334 = por %p332, %p333
      %s336 = sadd.s32 %s335, 1
      %p339 = scmp.eq.s32.totalorder %s28, 1
      %p340 = scmp.ne.s32.totalorder %s335, %s337
      %p341 = scmp.eq.s32.totalorder %s28, 0
      %p342 = por %p340, %p341
      %p343 = scmp.ne.s32.totalorder %s335, %s337
      %p344 = scmp.eq.s32.totalorder %s33, 1
      %p345 = por %p343, %p344
      %p346 = scmp.ne.s32.totalorder %s337, %s338
      %p347 = scmp.eq.s32.totalorder %s33, 0
      %p348 = por %p346, %p347
      %p349 = scmp.ne.s32.totalorder %s337, %s338
      %p350 = scmp.eq.s32.totalorder %s34, 1
      %p351 = por %p349, %p350
      %p353 = scmp.ne.s32.totalorder %s338, %s352
      %p354 = scmp.eq.s32.totalorder %s34, 0
      %p355 = por %p353, %p354
      %s356 = ssub.s32 %s28, %s35
      %p357 = scmp.eq.s32.totalorder %s356, 0
      %s359 = sadd.s32 %s358, 1
      %s360 = scalar_select %p357, %s358, %s359
      %p363 = pneg %p357
      %p364 = scmp.eq.s32.totalorder %s28, 1
      %p365 = por %p363, %p364
      %p366 = scmp.ne.s32.totalorder %s358, %s361
      %p367 = scmp.eq.s32.totalorder %s28, 0
      %p368 = por %p366, %p367
      %p369 = scmp.ne.s32.totalorder %s358, %s361
      %p370 = scmp.eq.s32.totalorder %s33, 1
      %p371 = por %p369, %p370
      %p372 = scmp.ne.s32.totalorder %s361, %s362
      %p373 = scmp.eq.s32.totalorder %s33, 0
      %p374 = por %p372, %p373
      %p375 = scmp.ne.s32.totalorder %s361, %s362
      %p376 = scmp.eq.s32.totalorder %s34, 1
      %p377 = por %p375, %p376
      %p379 = scmp.ne.s32.totalorder %s362, %s378
      %p380 = scmp.eq.s32.totalorder %s34, 0
      %p381 = por %p379, %p380
      %p382 = scmp.le.s32.totalorder 1, %s28
      %p383 = scmp.lt.s32.totalorder %s28, 3
      %p384 = pnand %p382, %p383
      %p385 = pneg %p384
      // Predicated region
      $region9: #{tpu_custom_call.1} parent=5 // pred_check
        _
      $region10: #{tpu_custom_call.1} parent=5 // pred_check_branch
        %387 = sbr.rel (%p384) target = $region12
      $region11: #{tpu_custom_call.1} parent=5 // pred_region
        %s388 = ssub.s32 %s28, 1
        // Predicated region
        $region13: #{tpu_custom_call.1} parent=11 // pred_check
          %p389 = pneg %p75
        $region14: #{tpu_custom_call.1} parent=11 // pred_check_branch
          %391 = sbr.rel (%p389) target = $region16
        $region15: #{tpu_custom_call.1} parent=11 // pred_region
          _
        $region16: #{tpu_custom_call.1} parent=11 // pred_fallthru
          _
        // Predicated region
        $region17: #{tpu_custom_call.1} parent=11 // pred_check
          %p392 = pneg %p96
        $region18: #{tpu_custom_call.1} parent=11 // pred_check_branch
          %394 = sbr.rel (%p392) target = $region20
        $region19: #{tpu_custom_call.1} parent=11 // pred_region
          _
        $region20: #{tpu_custom_call.1} parent=11 // pred_fallthru
          _
        // Predicated region
        $region21: #{tpu_custom_call.1} parent=11 // pred_check
          %p395 = pneg %p117
        $region22: #{tpu_custom_call.1} parent=11 // pred_check_branch
          %397 = sbr.rel (%p395) target = $region24
        $region23: #{tpu_custom_call.1} parent=11 // pred_region
          _
        $region24: #{tpu_custom_call.1} parent=11 // pred_fallthru
          _
        // Predicated region
        $region25: #{tpu_custom_call.1} parent=11 // pred_check
          %p398 = pneg %p138
        $region26: #{tpu_custom_call.1} parent=11 // pred_check_branch
          %400 = sbr.rel (%p398) target = $region28
        $region27: #{tpu_custom_call.1} parent=11 // pred_region
          _
        $region28: #{tpu_custom_call.1} parent=11 // pred_fallthru
          _
        // Predicated region
        $region29: #{tpu_custom_call.1} parent=11 // pred_check
          %p401 = pneg %p159
        $region30: #{tpu_custom_call.1} parent=11 // pred_check_branch
          %403 = sbr.rel (%p401) target = $region32
        $region31: #{tpu_custom_call.1} parent=11 // pred_region
          _
        $region32: #{tpu_custom_call.1} parent=11 // pred_fallthru
          _
        // Predicated region
        $region33: #{tpu_custom_call.1} parent=11 // pred_check
          %p404 = pneg %p180
        $region34: #{tpu_custom_call.1} parent=11 // pred_check_branch
          %406 = sbr.rel (%p404) target = $region36
        $region35: #{tpu_custom_call.1} parent=11 // pred_region
          _
        $region36: #{tpu_custom_call.1} parent=11 // pred_fallthru
          _
        // Predicated region
        $region37: #{tpu_custom_call.1} parent=11 // pred_check
          %p407 = pneg %p201
        $region38: #{tpu_custom_call.1} parent=11 // pred_check_branch
          %409 = sbr.rel (%p407) target = $region40
        $region39: #{tpu_custom_call.1} parent=11 // pred_region
          %s411 = ssub.s32 1024, 1024
          %412 = vsyncadd [#allocation8], %s411
          %s413 = sshll.u32 [#allocation7], 4
          %s414 = int_to_ptr.vmem [resolvable:$true] %s413
          %419 = dma.hbm_to_vmem [thread:$0]  %s7, 1024, %s414, [#allocation8], 128, 128, 8
        $region40: #{tpu_custom_call.1} parent=11 // pred_fallthru
          _
        // Predicated region
        $region41: #{tpu_custom_call.1} parent=11 // pred_check
          %p420 = pneg %p222
        $region42: #{tpu_custom_call.1} parent=11 // pred_check_branch
          %422 = sbr.rel (%p420) target = $region44
        $region43: #{tpu_custom_call.1} parent=11 // pred_region
          _
        $region44: #{tpu_custom_call.1} parent=11 // pred_fallthru
          _
        // Predicated region
        $region45: #{tpu_custom_call.1} parent=11 // pred_check
          %p423 = pneg %p243
        $region46: #{tpu_custom_call.1} parent=11 // pred_check_branch
          %425 = sbr.rel (%p423) target = $region48
        $region47: #{tpu_custom_call.1} parent=11 // pred_region
          _
        $region48: #{tpu_custom_call.1} parent=11 // pred_fallthru
          _
        // Predicated region
        $region49: #{tpu_custom_call.1} parent=11 // pred_check
          %p426 = pneg %p264
        $region50: #{tpu_custom_call.1} parent=11 // pred_check_branch
          %428 = sbr.rel (%p426) target = $region52
        $region51: #{tpu_custom_call.1} parent=11 // pred_region
          _
        $region52: #{tpu_custom_call.1} parent=11 // pred_fallthru
          _
        // Predicated region
        $region53: #{tpu_custom_call.1} parent=11 // pred_check
          %p429 = pneg %p285
        $region54: #{tpu_custom_call.1} parent=11 // pred_check_branch
          %431 = sbr.rel (%p429) target = $region56
        $region55: #{tpu_custom_call.1} parent=11 // pred_region
          _
        $region56: #{tpu_custom_call.1} parent=11 // pred_fallthru
          _
        // Predicated region
        $region57: #{tpu_custom_call.1} parent=11 // pred_check
          %p432 = pneg %p306
        $region58: #{tpu_custom_call.1} parent=11 // pred_check_branch
          %434 = sbr.rel (%p432) target = $region60
        $region59: #{tpu_custom_call.1} parent=11 // pred_region
          _
        $region60: #{tpu_custom_call.1} parent=11 // pred_fallthru
          _
        // Predicated region
        $region61: #{tpu_custom_call.1} parent=11 // pred_check
          %p435 = pneg %p327
        $region62: #{tpu_custom_call.1} parent=11 // pred_check_branch
          %437 = sbr.rel (%p435) target = $region64
        $region63: #{tpu_custom_call.1} parent=11 // pred_region
          %s439 = ssub.s32 512, 512
          %440 = vsyncadd [#allocation8], %s439
          %s441 = sshll.u32 [#allocation9], 4
          %s442 = int_to_ptr.vmem [resolvable:$true] %s441
          %447 = dma.hbm_to_vmem [thread:$0]  %s13, 512, %s442, [#allocation8], 128, 128, 8
        $region64: #{tpu_custom_call.1} parent=11 // pred_fallthru
          _
        // Predicated region
        $region65: #{tpu_custom_call.1} parent=11 // pred_check
          %p448 = pneg %p348
        $region66: #{tpu_custom_call.1} parent=11 // pred_check_branch
          %450 = sbr.rel (%p448) target = $region68
        $region67: #{tpu_custom_call.1} parent=11 // pred_region
          _
        $region68: #{tpu_custom_call.1} parent=11 // pred_fallthru
          _
      $region12: #{tpu_custom_call.1} parent=5 // pred_fallthru
        _
      %p451 = scmp.lt.s32.totalorder %s28, 2
      // Predicated region
      $region69: #{tpu_custom_call.1} parent=5 // pred_check
        %p452 = pneg %p451
      $region70: #{tpu_custom_call.1} parent=5 // pred_check_branch
        %454 = sbr.rel (%p452) target = $region72
      $region71: #{tpu_custom_call.1} parent=5 // pred_region
        // Predicated region
        $region73: #{tpu_custom_call.1} parent=71 // pred_check
          %p455 = pneg %p48
        $region74: #{tpu_custom_call.1} parent=71 // pred_check_branch
          %457 = sbr.rel (%p455) target = $region76
        $region75: #{tpu_custom_call.1} parent=71 // pred_region
          %s458 = sand.u32 %s38, 1
          %s459 = scalar_lea.sflag [#allocation5], %s458
          %s460 = sand.u32 %s38, 1
          %s461 = smul.addr %s460, 16
          %s462 = scalar_lea.vmem [#allocation4], %s461
          %s464 = ssub.s32 256, 256
          %465 = vsyncadd %s459, %s464
          %s466 = smul.addr %s28, 2
          %s467 = smul.addr %s466, 128
          %s468 = scalar_lea.hbm %s0, %s467
          %s469 = sshll.u32 %s462, 4
          %s470 = int_to_ptr.vmem [resolvable:$true] %s469
          %475 = dma.hbm_to_vmem [thread:$0]  %s468, 256, %s470, %s459, 128, 128, 8
        $region76: #{tpu_custom_call.1} parent=71 // pred_fallthru
          _
      $region72: #{tpu_custom_call.1} parent=5 // pred_fallthru
        _
      %p476 = scmp.le.s32.totalorder 1, %s28
      %p477 = scmp.lt.s32.totalorder %s28, 3
      %p478 = pnand %p476, %p477
      %p479 = pneg %p478
      // Predicated region
      $region77: #{tpu_custom_call.1} parent=5 // pred_check
        _
      $region78: #{tpu_custom_call.1} parent=5 // pred_check_branch
        %481 = sbr.rel (%p478) target = $region80
      $region79: #{tpu_custom_call.1} parent=5 // pred_region
        %s482 = ssub.s32 %s28, 1
        %s483 = sand.u32 %s41, 1
        %s484 = scalar_lea.sflag [#allocation5], %s483
        %s485 = sand.u32 %s41, 1
        %s486 = smul.addr %s485, 16
        %s487 = scalar_lea.vmem [#allocation4], %s486
        // Predicated region
        $region81: #{tpu_custom_call.1} parent=79 // pred_check
          %p488 = pneg %p54
        $region82: #{tpu_custom_call.1} parent=79 // pred_check_branch
          %490 = sbr.rel (%p488) target = $region84
        $region83: #{tpu_custom_call.1} parent=79 // pred_region
          %491 = dma.done %s484, 256
        $region84: #{tpu_custom_call.1} parent=79 // pred_fallthru
          _
        // Predicated region
        $region85: #{tpu_custom_call.1} parent=79 // pred_check
          %p492 = pneg %p201
        $region86: #{tpu_custom_call.1} parent=79 // pred_check_branch
          %494 = sbr.rel (%p492) target = $region88
        $region87: #{tpu_custom_call.1} parent=79 // pred_region
          %495 = dma.done [#allocation8], 1024
        $region88: #{tpu_custom_call.1} parent=79 // pred_fallthru
          _
        // Predicated region
        $region89: #{tpu_custom_call.1} parent=79 // pred_check
          %p496 = pneg %p327
        $region90: #{tpu_custom_call.1} parent=79 // pred_check_branch
          %498 = sbr.rel (%p496) target = $region92
        $region91: #{tpu_custom_call.1} parent=79 // pred_region
          %499 = dma.done [#allocation8], 512
        $region92: #{tpu_custom_call.1} parent=79 // pred_fallthru
          _
        %s500 = sand.u32 %s41, 1
        %s501 = scalar_lea.sflag [#allocation5], %s500
        %s502 = sand.u32 %s41, 1
        %s503 = smul.addr %s502, 16
        %s504 = scalar_lea.vmem [#allocation4], %s503
        %p505 = pneg %p54
        %p506 = pneg %p51
        %p507 = pneg %p75
        %p508 = pneg %p72
        %p509 = pneg %p96
        %p510 = pneg %p93
        %p511 = pneg %p117
        %p512 = pneg %p114
        %p513 = pneg %p138
        %p514 = pneg %p135
        %p515 = pneg %p159
        %p516 = pneg %p156
        %p517 = pneg %p180
        %p518 = pneg %p177
        %p519 = pneg %p201
        %p520 = pneg %p198
        %p521 = pneg %p222
        %p522 = pneg %p219
        %p523 = pneg %p243
        %p524 = pneg %p240
        %p525 = pneg %p264
        %p526 = pneg %p261
        %p527 = pneg %p285
        %p528 = pneg %p282
        %p529 = pneg %p306
        %p530 = pneg %p303
        %p531 = pneg %p327
        %p532 = pneg %p324
        %p533 = pneg %p348
        %p534 = pneg %p345
        %p535 = pneg %p374
        %p536 = pneg %p371
        %s537 = sand.u32 %s361, 1
        %s538 = scalar_lea.sflag [#allocation6], %s537
        %s539 = sand.u32 %s361, 1
        %s540 = scalar_lea.vmem [#allocation10], %s539
        %vm541 = vcmask 516096
        %542 = vst.msk [vmem:[#allocation2] sm:$0x1] %vm541, 0.0
        %543 = vst.msk [vmem:[#allocation2 + $0x11] sm:$0x1] %vm541, 0.0
        %v544 = vld [vmem:[%s487] sm:$0xff]
        %v545 = vld [vmem:[%s487 + $0x8] sm:$0xff]
        %vm546 = vcmask 523264
        %547 = vst.msk [vmem:[#allocation2 + $0x1] sm:$0xff] %vm546, %v544
        %548 = vst.msk [vmem:[#allocation2 + $0x9] sm:$0xff] %vm546, %v545
        %v549 = vld [vmem:[#allocation2] sm:$0xff]
        %v550 = vld [vmem:[#allocation2 + $0x8] sm:$0xff]
        %v551 = vld [vmem:[#allocation2 + $0x1] sm:$0xff]
        %v552 = vld [vmem:[#allocation2 + $0x9] sm:$0xff]
        %v553 = vld [vmem:[#allocation2 + $0x2] sm:$0xff]
        %v554 = vld [vmem:[#allocation2 + $0xa] sm:$0xff]
        %v555 = vld [vmem:[%s1] sm:$0xff]
        %v556 = vld [vmem:[%s1 + $0x8] sm:$0xff]
        %v557 = vld [vmem:[%s1 + $0x10] sm:$0xff]
        %v558 = vld [vmem:[%s1 + $0x18] sm:$0xff]
        %v559 = vld [vmem:[%s1 + $0x20] sm:$0xff]
        %v560 = vld [vmem:[%s1 + $0x28] sm:$0xff]
        %v561 = vld [vmem:[%s1 + $0x30] sm:$0xff]
        %v562 = vld [vmem:[%s1 + $0x38] sm:$0xff]
        %v563 = vld [vmem:[%s2] sm:$0xff]
        %v564 = vld [vmem:[%s2 + $0x8] sm:$0xff]
        %v565 = vld [vmem:[%s2 + $0x10] sm:$0xff]
        %v566 = vld [vmem:[%s2 + $0x18] sm:$0xff]
        %v567 = vld [vmem:[%s2 + $0x20] sm:$0xff]
        %v568 = vld [vmem:[%s2 + $0x28] sm:$0xff]
        %v569 = vld [vmem:[%s2 + $0x30] sm:$0xff]
        %v570 = vld [vmem:[%s2 + $0x38] sm:$0xff]
        %v572 = vsel %vm546, %v551, 0
        %v575 = vsel %vm546, %v552, 0
        %577 = vmatprep.subr.mxu0 0.0
        %578 = vmatpush1.msra.mxu0 %v563
        %579 = vmatprep.subr.mxu0 0.0
        %580 = vmatpush1.msra.mxu0 %v564
        %581 = vmatprep.subr.mxu0 0.0
        %582 = vmatpush1.msra.mxu0 %v565
        %583 = vmatprep.subr.mxu0 0.0
        %584 = vmatpush1.msra.mxu0 %v566
        %585 = vmatprep.subr.mxu0 0.0
        %586 = vmatpush1.msra.mxu0 %v567
        %587 = vmatprep.subr.mxu0 0.0
        %588 = vmatpush1.msra.mxu0 %v568
        %589 = vmatprep.subr.mxu0 0.0
        %590 = vmatpush1.msra.mxu0 %v569
        %591 = vmatprep.subr.mxu0 0.0
        %592 = vmatpush1.msra.mxu0 %v570
        %593 = vmatprep.subr.mxu0 0.0
        %594 = vmatpush1.msra.mxu0 0.0
        %595 = vmatprep.subr.mxu0 0.0
        %596 = vmatpush1.msra.mxu0 0.0
        %597 = vmatprep.subr.mxu0 0.0
        %598 = vmatpush1.msra.mxu0 0.0
        %599 = vmatprep.subr.mxu0 0.0
        %600 = vmatpush1.msra.mxu0 0.0
        %601 = vmatprep.subr.mxu0 0.0
        %602 = vmatpush1.msra.mxu0 0.0
        %603 = vmatprep.subr.mxu0 0.0
        %604 = vmatpush1.msra.mxu0 0.0
        %605 = vmatprep.subr.mxu0 0.0
        %606 = vmatpush1.msra.mxu0 0.0
        %607 = vmatprep.subr.mxu0 0.0
        %608 = vmatpush1.msra.mxu0 0.0
        %609 = vmatprep.subr.mxu0 0.0
        %610 = vmatpush1.msra.mxu0 0.0
        %611 = vmatprep.subr.mxu0 0.0
        %612 = vmatpush1.msra.mxu0 0.0
        %613 = vmatprep.subr.mxu0 0.0
        %614 = vmatpush1.msra.mxu0 0.0
        %615 = vmatprep.subr.mxu0 0.0
        %616 = vmatpush1.msra.mxu0 0.0
        %617 = vmatprep.subr.mxu0 0.0
        %618 = vmatpush1.msra.mxu0 0.0
        %619 = vmatprep.subr.mxu0 0.0
        %620 = vmatpush1.msra.mxu0 0.0
        %621 = vmatprep.subr.mxu0 0.0
        %622 = vmatpush1.msra.mxu0 0.0
        %623 = vmatprep.subr.mxu0 0.0
        %624 = vmatpush1.msra.mxu0 0.0
        %625 = vmatprep.subr.mxu0 0.0
        %626 = vmatpush1.msra.mxu0 0.0
        %627 = vmatprep.subr.mxu0 0.0
        %628 = vmatpush1.msra.mxu0 0.0
        %629 = vmatprep.subr.mxu0 0.0
        %630 = vmatpush1.msra.mxu0 0.0
        %631 = vmatprep.subr.mxu0 0.0
        %632 = vmatpush1.msra.mxu0 0.0
        %633 = vmatprep.subr.mxu0 0.0
        %634 = vmatpush1.msra.mxu0 0.0
        %635 = vmatprep.subr.mxu0 0.0
        %636 = vmatpush1.msra.mxu0 0.0
        %637 = vmatprep.subr.mxu0 0.0
        %638 = vmatpush1.msra.mxu0 0.0
        %639 = vmatprep.subr.mxu0 0.0
        %640 = vmatpush1.msra.mxu0 0.0
        %641 = vmatprep.mubr.f32.mxu0 0.0
        %642 = vmatmul.mubr.f32.gmra.mrb[0].mxu0 %v572
        %v643 = vpop.f32.mrb[0].mxu0
        %v644 = vadd.f32 0.0, %v643
        %v645 = vpop.f32.mrb[0].mxu0
        %646 = vmatprep.mubr.f32.mxu0 0.0
        %647 = vmatmul.mubr.f32.gmra.mrb[0].mxu0 %v575
        %v648 = vpop.f32.mrb[0].mxu0
        %v649 = vadd.f32 0.0, %v648
        %v650 = vpop.f32.mrb[0].mxu0
        %651 = vdwg.mxu0
        %v653 = vsel %vm546, %v549, 0
        %v656 = vsel %vm546, %v550, 0
        %658 = vmatprep.subr.mxu0 0.0
        %659 = vmatpush1.msra.mxu0 %v555
        %660 = vmatprep.subr.mxu0 0.0
        %661 = vmatpush1.msra.mxu0 %v556
        %662 = vmatprep.subr.mxu0 0.0
        %663 = vmatpush1.msra.mxu0 %v557
        %664 = vmatprep.subr.mxu0 0.0
        %665 = vmatpush1.msra.mxu0 %v558
        %666 = vmatprep.subr.mxu0 0.0
        %667 = vmatpush1.msra.mxu0 %v559
        %668 = vmatprep.subr.mxu0 0.0
        %669 = vmatpush1.msra.mxu0 %v560
        %670 = vmatprep.subr.mxu0 0.0
        %671 = vmatpush1.msra.mxu0 %v561
        %672 = vmatprep.subr.mxu0 0.0
        %673 = vmatpush1.msra.mxu0 %v562
        %674 = vmatprep.subr.mxu0 0.0
        %675 = vmatpush1.msra.mxu0 0.0
        %676 = vmatprep.subr.mxu0 0.0
        %677 = vmatpush1.msra.mxu0 0.0
        %678 = vmatprep.subr.mxu0 0.0
        %679 = vmatpush1.msra.mxu0 0.0
        %680 = vmatprep.subr.mxu0 0.0
        %681 = vmatpush1.msra.mxu0 0.0
        %682 = vmatprep.subr.mxu0 0.0
        %683 = vmatpush1.msra.mxu0 0.0
        %684 = vmatprep.subr.mxu0 0.0
        %685 = vmatpush1.msra.mxu0 0.0
        %686 = vmatprep.subr.mxu0 0.0
        %687 = vmatpush1.msra.mxu0 0.0
        %688 = vmatprep.subr.mxu0 0.0
        %689 = vmatpush1.msra.mxu0 0.0
        %690 = vmatprep.subr.mxu0 0.0
        %691 = vmatpush1.msra.mxu0 0.0
        %692 = vmatprep.subr.mxu0 0.0
        %693 = vmatpush1.msra.mxu0 0.0
        %694 = vmatprep.subr.mxu0 0.0
        %695 = vmatpush1.msra.mxu0 0.0
        %696 = vmatprep.subr.mxu0 0.0
        %697 = vmatpush1.msra.mxu0 0.0
        %698 = vmatprep.subr.mxu0 0.0
        %699 = vmatpush1.msra.mxu0 0.0
        %700 = vmatprep.subr.mxu0 0.0
        %701 = vmatpush1.msra.mxu0 0.0
        %702 = vmatprep.subr.mxu0 0.0
        %703 = vmatpush1.msra.mxu0 0.0
        %704 = vmatprep.subr.mxu0 0.0
        %705 = vmatpush1.msra.mxu0 0.0
        %706 = vmatprep.subr.mxu0 0.0
        %707 = vmatpush1.msra.mxu0 0.0
        %708 = vmatprep.subr.mxu0 0.0
        %709 = vmatpush1.msra.mxu0 0.0
        %710 = vmatprep.subr.mxu0 0.0
        %711 = vmatpush1.msra.mxu0 0.0
        %712 = vmatprep.subr.mxu0 0.0
        %713 = vmatpush1.msra.mxu0 0.0
        %714 = vmatprep.subr.mxu0 0.0
        %715 = vmatpush1.msra.mxu0 0.0
        %716 = vmatprep.subr.mxu0 0.0
        %717 = vmatpush1.msra.mxu0 0.0
        %718 = vmatprep.subr.mxu0 0.0
        %719 = vmatpush1.msra.mxu0 0.0
        %720 = vmatprep.subr.mxu0 0.0
        %721 = vmatpush1.msra.mxu0 0.0
        %722 = vmatprep.mubr.f32.mxu0 0.0
        %723 = vmatmul.mubr.f32.gmra.mrb[0].mxu0 %v653
        %v724 = vpop.f32.mrb[0].mxu0
        %v725 = vadd.f32 %v644, %v724
        %v726 = vpop.f32.mrb[0].mxu0
        %727 = vmatprep.mubr.f32.mxu0 0.0
        %728 = vmatmul.mubr.f32.gmra.mrb[0].mxu0 %v656
        %v729 = vpop.f32.mrb[0].mxu0
        %v730 = vadd.f32 %v649, %v729
        %v731 = vpop.f32.mrb[0].mxu0
        %732 = vdwg.mxu0
        %v733 = vld [vmem:[%s3] sm:$0xff]
        %v734 = vld [vmem:[%s3 + $0x8] sm:$0xff]
        %v735 = vld [vmem:[%s3 + $0x10] sm:$0xff]
        %v736 = vld [vmem:[%s3 + $0x18] sm:$0xff]
        %v737 = vld [vmem:[%s3 + $0x20] sm:$0xff]
        %v738 = vld [vmem:[%s3 + $0x28] sm:$0xff]
        %v739 = vld [vmem:[%s3 + $0x30] sm:$0xff]
        %v740 = vld [vmem:[%s3 + $0x38] sm:$0xff]
        %v742 = vsel %vm546, %v553, 0
        %v745 = vsel %vm546, %v554, 0
        %747 = vmatprep.subr.mxu0 0.0
        %748 = vmatpush1.msra.mxu0 %v733
        %749 = vmatprep.subr.mxu0 0.0
        %750 = vmatpush1.msra.mxu0 %v734
        %751 = vmatprep.subr.mxu0 0.0
        %752 = vmatpush1.msra.mxu0 %v735
        %753 = vmatprep.subr.mxu0 0.0
        %754 = vmatpush1.msra.mxu0 %v736
        %755 = vmatprep.subr.mxu0 0.0
        %756 = vmatpush1.msra.mxu0 %v737
        %757 = vmatprep.subr.mxu0 0.0
        %758 = vmatpush1.msra.mxu0 %v738
        %759 = vmatprep.subr.mxu0 0.0
        %760 = vmatpush1.msra.mxu0 %v739
        %761 = vmatprep.subr.mxu0 0.0
        %762 = vmatpush1.msra.mxu0 %v740
        %763 = vmatprep.subr.mxu0 0.0
        %764 = vmatpush1.msra.mxu0 0.0
        %765 = vmatprep.subr.mxu0 0.0
        %766 = vmatpush1.msra.mxu0 0.0
        %767 = vmatprep.subr.mxu0 0.0
        %768 = vmatpush1.msra.mxu0 0.0
        %769 = vmatprep.subr.mxu0 0.0
        %770 = vmatpush1.msra.mxu0 0.0
        %771 = vmatprep.subr.mxu0 0.0
        %772 = vmatpush1.msra.mxu0 0.0
        %773 = vmatprep.subr.mxu0 0.0
        %774 = vmatpush1.msra.mxu0 0.0
        %775 = vmatprep.subr.mxu0 0.0
        %776 = vmatpush1.msra.mxu0 0.0
        %777 = vmatprep.subr.mxu0 0.0
        %778 = vmatpush1.msra.mxu0 0.0
        %779 = vmatprep.subr.mxu0 0.0
        %780 = vmatpush1.msra.mxu0 0.0
        %781 = vmatprep.subr.mxu0 0.0
        %782 = vmatpush1.msra.mxu0 0.0
        %783 = vmatprep.subr.mxu0 0.0
        %784 = vmatpush1.msra.mxu0 0.0
        %785 = vmatprep.subr.mxu0 0.0
        %786 = vmatpush1.msra.mxu0 0.0
        %787 = vmatprep.subr.mxu0 0.0
        %788 = vmatpush1.msra.mxu0 0.0
        %789 = vmatprep.subr.mxu0 0.0
        %790 = vmatpush1.msra.mxu0 0.0
        %791 = vmatprep.subr.mxu0 0.0
        %792 = vmatpush1.msra.mxu0 0.0
        %793 = vmatprep.subr.mxu0 0.0
        %794 = vmatpush1.msra.mxu0 0.0
        %795 = vmatprep.subr.mxu0 0.0
        %796 = vmatpush1.msra.mxu0 0.0
        %797 = vmatprep.subr.mxu0 0.0
        %798 = vmatpush1.msra.mxu0 0.0
        %799 = vmatprep.subr.mxu0 0.0
        %800 = vmatpush1.msra.mxu0 0.0
        %801 = vmatprep.subr.mxu0 0.0
        %802 = vmatpush1.msra.mxu0 0.0
        %803 = vmatprep.subr.mxu0 0.0
        %804 = vmatpush1.msra.mxu0 0.0
        %805 = vmatprep.subr.mxu0 0.0
        %806 = vmatpush1.msra.mxu0 0.0
        %807 = vmatprep.subr.mxu0 0.0
        %808 = vmatpush1.msra.mxu0 0.0
        %809 = vmatprep.subr.mxu0 0.0
        %810 = vmatpush1.msra.mxu0 0.0
        %811 = vmatprep.mubr.f32.mxu0 0.0
        %812 = vmatmul.mubr.f32.gmra.mrb[0].mxu0 %v742
        %v813 = vpop.f32.mrb[0].mxu0
        %v814 = vadd.f32 0.0, %v813
        %v815 = vpop.f32.mrb[0].mxu0
        %816 = vmatprep.mubr.f32.mxu0 0.0
        %817 = vmatmul.mubr.f32.gmra.mrb[0].mxu0 %v745
        %v818 = vpop.f32.mrb[0].mxu0
        %v819 = vadd.f32 0.0, %v818
        %v820 = vpop.f32.mrb[0].mxu0
        %821 = vdwg.mxu0
        %v822 = vadd.f32 %v725, %v814
        %v823 = vadd.f32 %v730, %v819
        %v824 = vld [vmem:[%s4] sm:$0x1]
        %v826 = vlaneseq
        %v827 = vshrl.u32 %v826, 7
        %v828 = vsub.s32 0, %v827
        %v829 = vrot.slane %v824, %v828
        %v831 = vadd.f32 %v822, %v829
        %v832 = vadd.f32 %v823, %v829
        %v833 = vmax.f32 %v831, 0.0
        %v834 = vmax.f32 %v832, 0.0
        %837 = vrot.lane.b32.xlu0 %v833, 112
        %v838 = vpop.permute.xlu0 %837
        %839 = vrot.lane.b32.xlu0 %v834, 112
        %v840 = vpop.permute.xlu0 %839
        %843 = vrot.lane.b32.xlu0 %v833, 96
        %v844 = vpop.permute.xlu0 %843
        %845 = vrot.lane.b32.xlu0 %v834, 96
        %v846 = vpop.permute.xlu0 %845
        %849 = vrot.lane.b32.xlu0 %v833, 80
        %v850 = vpop.permute.xlu0 %849
        %851 = vrot.lane.b32.xlu0 %v834, 80
        %v852 = vpop.permute.xlu0 %851
        %855 = vrot.lane.b32.xlu0 %v833, 64
        %v856 = vpop.permute.xlu0 %855
        %857 = vrot.lane.b32.xlu0 %v834, 64
        %v858 = vpop.permute.xlu0 %857
        %861 = vrot.lane.b32.xlu0 %v833, 48
        %v862 = vpop.permute.xlu0 %861
        %863 = vrot.lane.b32.xlu0 %v834, 48
        %v864 = vpop.permute.xlu0 %863
        %867 = vrot.lane.b32.xlu0 %v833, 32
        %v868 = vpop.permute.xlu0 %867
        %869 = vrot.lane.b32.xlu0 %v834, 32
        %v870 = vpop.permute.xlu0 %869
        %873 = vrot.lane.b32.xlu0 %v833, 16
        %v874 = vpop.permute.xlu0 %873
        %875 = vrot.lane.b32.xlu0 %v834, 16
        %v876 = vpop.permute.xlu0 %875
        %v879 = vcombine.low %v833, %v844
        %v880 = vcombine.high %v833, %v844
        %v882 = vunpack.c.l.s4 1983009808
        %v883 = vunpack.c.0.s8 %v882
        %v884 = vlaneseq
        %v885 = vshrl.u32 %v884, 7
        %v886 = vsub.s32 %v883, %v885
        %v887 = vrot.slane %v879, %v886
        %v889 = vunpack.c.l.s4 1983009808
        %v890 = vunpack.c.0.s8 %v889
        %v891 = vlaneseq
        %v892 = vshrl.u32 %v891, 7
        %v893 = vsub.s32 %v890, %v892
        %v894 = vrot.slane %v880, %v893
        %v895 = vcombine.low %v838, %v850
        %v896 = vcombine.high %v838, %v850
        %v898 = vunpack.c.l.s4 1983009808
        %v899 = vunpack.c.0.s8 %v898
        %v900 = vlaneseq
        %v901 = vshrl.u32 %v900, 7
        %v902 = vsub.s32 %v899, %v901
        %v903 = vrot.slane %v895, %v902
        %v905 = vunpack.c.l.s4 1983009808
        %v906 = vunpack.c.0.s8 %v905
        %v907 = vlaneseq
        %v908 = vshrl.u32 %v907, 7
        %v909 = vsub.s32 %v906, %v908
        %v910 = vrot.slane %v896, %v909
        %v911 = vcombine.low %v856, %v868
        %v912 = vcombine.high %v856, %v868
        %v914 = vunpack.c.l.s4 1983009808
        %v915 = vunpack.c.0.s8 %v914
        %v916 = vlaneseq
        %v917 = vshrl.u32 %v916, 7
        %v918 = vsub.s32 %v915, %v917
        %v919 = vrot.slane %v911, %v918
        %v921 = vunpack.c.l.s4 1983009808
        %v922 = vunpack.c.0.s8 %v921
        %v923 = vlaneseq
        %v924 = vshrl.u32 %v923, 7
        %v925 = vsub.s32 %v922, %v924
        %v926 = vrot.slane %v912, %v925
        %v927 = vcombine.low %v862, %v874
        %v928 = vcombine.high %v862, %v874
        %v930 = vunpack.c.l.s4 1983009808
        %v931 = vunpack.c.0.s8 %v930
        %v932 = vlaneseq
        %v933 = vshrl.u32 %v932, 7
        %v934 = vsub.s32 %v931, %v933
        %v935 = vrot.slane %v927, %v934
        %v937 = vunpack.c.l.s4 1983009808
        %v938 = vunpack.c.0.s8 %v937
        %v939 = vlaneseq
        %v940 = vshrl.u32 %v939, 7
        %v941 = vsub.s32 %v938, %v940
        %v942 = vrot.slane %v928, %v941
        %v943 = vcombine.low %v887, %v903
        %v944 = vcombine.high %v887, %v903
        %v946 = vunpack.c.l.s4 1934713408
        %v947 = vunpack.c.0.s8 %v946
        %v948 = vlaneseq
        %v949 = vshrl.u32 %v948, 7
        %v950 = vsub.s32 %v947, %v949
        %v951 = vrot.slane %v943, %v950
        %v953 = vunpack.c.l.s4 1934713408
        %v954 = vunpack.c.0.s8 %v953
        %v955 = vlaneseq
        %v956 = vshrl.u32 %v955, 7
        %v957 = vsub.s32 %v954, %v956
        %v958 = vrot.slane %v944, %v957
        %v959 = vcombine.low %v894, %v910
        %v960 = vcombine.high %v894, %v910
        %v962 = vunpack.c.l.s4 1934713408
        %v963 = vunpack.c.0.s8 %v962
        %v964 = vlaneseq
        %v965 = vshrl.u32 %v964, 7
        %v966 = vsub.s32 %v963, %v965
        %v967 = vrot.slane %v959, %v966
        %v969 = vunpack.c.l.s4 1934713408
        %v970 = vunpack.c.0.s8 %v969
        %v971 = vlaneseq
        %v972 = vshrl.u32 %v971, 7
        %v973 = vsub.s32 %v970, %v972
        %v974 = vrot.slane %v960, %v973
        %v975 = vcombine.low %v919, %v935
        %v976 = vcombine.high %v919, %v935
        %v978 = vunpack.c.l.s4 1934713408
        %v979 = vunpack.c.0.s8 %v978
        %v980 = vlaneseq
        %v981 = vshrl.u32 %v980, 7
        %v982 = vsub.s32 %v979, %v981
        %v983 = vrot.slane %v975, %v982
        %v985 = vunpack.c.l.s4 1934713408
        %v986 = vunpack.c.0.s8 %v985
        %v987 = vlaneseq
        %v988 = vshrl.u32 %v987, 7
        %v989 = vsub.s32 %v986, %v988
        %v990 = vrot.slane %v976, %v989
        %v991 = vcombine.low %v926, %v942
        %v992 = vcombine.high %v926, %v942
        %v994 = vunpack.c.l.s4 1934713408
        %v995 = vunpack.c.0.s8 %v994
        %v996 = vlaneseq
        %v997 = vshrl.u32 %v996, 7
        %v998 = vsub.s32 %v995, %v997
        %v999 = vrot.slane %v991, %v998
        %v1001 = vunpack.c.l.s4 1934713408
        %v1002 = vunpack.c.0.s8 %v1001
        %v1003 = vlaneseq
        %v1004 = vshrl.u32 %v1003, 7
        %v1005 = vsub.s32 %v1002, %v1004
        %v1006 = vrot.slane %v992, %v1005
        %v1007 = vcombine.low %v951, %v983
        %v1008 = vcombine.high %v951, %v983
        %v1009 = vcombine.low %v958, %v990
        %v1010 = vcombine.high %v958, %v990
        %v1011 = vcombine.low %v967, %v999
        %v1012 = vcombine.high %v967, %v999
        %v1013 = vcombine.low %v974, %v1006
        %v1014 = vcombine.high %v974, %v1006
        %v1015 = vcombine.low %v834, %v846
        %v1016 = vcombine.high %v834, %v846
        %v1018 = vunpack.c.l.s4 1983009808
        %v1019 = vunpack.c.0.s8 %v1018
        %v1020 = vlaneseq
        %v1021 = vshrl.u32 %v1020, 7
        %v1022 = vsub.s32 %v1019, %v1021
        %v1023 = vrot.slane %v1015, %v1022
        %v1025 = vunpack.c.l.s4 1983009808
        %v1026 = vunpack.c.0.s8 %v1025
        %v1027 = vlaneseq
        %v1028 = vshrl.u32 %v1027, 7
        %v1029 = vsub.s32 %v1026, %v1028
        %v1030 = vrot.slane %v1016, %v1029
        %v1031 = vcombine.low %v840, %v852
        %v1032 = vcombine.high %v840, %v852
        %v1034 = vunpack.c.l.s4 1983009808
        %v1035 = vunpack.c.0.s8 %v1034
        %v1036 = vlaneseq
        %v1037 = vshrl.u32 %v1036, 7
        %v1038 = vsub.s32 %v1035, %v1037
        %v1039 = vrot.slane %v1031, %v1038
        %v1041 = vunpack.c.l.s4 1983009808
        %v1042 = vunpack.c.0.s8 %v1041
        %v1043 = vlaneseq
        %v1044 = vshrl.u32 %v1043, 7
        %v1045 = vsub.s32 %v1042, %v1044
        %v1046 = vrot.slane %v1032, %v1045
        %v1047 = vcombine.low %v858, %v870
        %v1048 = vcombine.high %v858, %v870
        %v1050 = vunpack.c.l.s4 1983009808
        %v1051 = vunpack.c.0.s8 %v1050
        %v1052 = vlaneseq
        %v1053 = vshrl.u32 %v1052, 7
        %v1054 = vsub.s32 %v1051, %v1053
        %v1055 = vrot.slane %v1047, %v1054
        %v1057 = vunpack.c.l.s4 1983009808
        %v1058 = vunpack.c.0.s8 %v1057
        %v1059 = vlaneseq
        %v1060 = vshrl.u32 %v1059, 7
        %v1061 = vsub.s32 %v1058, %v1060
        %v1062 = vrot.slane %v1048, %v1061
        %v1063 = vcombine.low %v864, %v876
        %v1064 = vcombine.high %v864, %v876
        %v1066 = vunpack.c.l.s4 1983009808
        %v1067 = vunpack.c.0.s8 %v1066
        %v1068 = vlaneseq
        %v1069 = vshrl.u32 %v1068, 7
        %v1070 = vsub.s32 %v1067, %v1069
        %v1071 = vrot.slane %v1063, %v1070
        %v1073 = vunpack.c.l.s4 1983009808
        %v1074 = vunpack.c.0.s8 %v1073
        %v1075 = vlaneseq
        %v1076 = vshrl.u32 %v1075, 7
        %v1077 = vsub.s32 %v1074, %v1076
        %v1078 = vrot.slane %v1064, %v1077
        %v1079 = vcombine.low %v1023, %v1039
        %v1080 = vcombine.high %v1023, %v1039
        %v1082 = vunpack.c.l.s4 1934713408
        %v1083 = vunpack.c.0.s8 %v1082
        %v1084 = vlaneseq
        %v1085 = vshrl.u32 %v1084, 7
        %v1086 = vsub.s32 %v1083, %v1085
        %v1087 = vrot.slane %v1079, %v1086
        %v1089 = vunpack.c.l.s4 1934713408
        %v1090 = vunpack.c.0.s8 %v1089
        %v1091 = vlaneseq
        %v1092 = vshrl.u32 %v1091, 7
        %v1093 = vsub.s32 %v1090, %v1092
        %v1094 = vrot.slane %v1080, %v1093
        %v1095 = vcombine.low %v1030, %v1046
        %v1096 = vcombine.high %v1030, %v1046
        %v1098 = vunpack.c.l.s4 1934713408
        %v1099 = vunpack.c.0.s8 %v1098
        %v1100 = vlaneseq
        %v1101 = vshrl.u32 %v1100, 7
        %v1102 = vsub.s32 %v1099, %v1101
        %v1103 = vrot.slane %v1095, %v1102
        %v1105 = vunpack.c.l.s4 1934713408
        %v1106 = vunpack.c.0.s8 %v1105
        %v1107 = vlaneseq
        %v1108 = vshrl.u32 %v1107, 7
        %v1109 = vsub.s32 %v1106, %v1108
        %v1110 = vrot.slane %v1096, %v1109
        %v1111 = vcombine.low %v1055, %v1071
        %v1112 = vcombine.high %v1055, %v1071
        %v1114 = vunpack.c.l.s4 1934713408
        %v1115 = vunpack.c.0.s8 %v1114
        %v1116 = vlaneseq
        %v1117 = vshrl.u32 %v1116, 7
        %v1118 = vsub.s32 %v1115, %v1117
        %v1119 = vrot.slane %v1111, %v1118
        %v1121 = vunpack.c.l.s4 1934713408
        %v1122 = vunpack.c.0.s8 %v1121
        %v1123 = vlaneseq
        %v1124 = vshrl.u32 %v1123, 7
        %v1125 = vsub.s32 %v1122, %v1124
        %v1126 = vrot.slane %v1112, %v1125
        %v1127 = vcombine.low %v1062, %v1078
        %v1128 = vcombine.high %v1062, %v1078
        %v1130 = vunpack.c.l.s4 1934713408
        %v1131 = vunpack.c.0.s8 %v1130
        %v1132 = vlaneseq
        %v1133 = vshrl.u32 %v1132, 7
        %v1134 = vsub.s32 %v1131, %v1133
        %v1135 = vrot.slane %v1127, %v1134
        %v1137 = vunpack.c.l.s4 1934713408
        %v1138 = vunpack.c.0.s8 %v1137
        %v1139 = vlaneseq
        %v1140 = vshrl.u32 %v1139, 7
        %v1141 = vsub.s32 %v1138, %v1140
        %v1142 = vrot.slane %v1128, %v1141
        %v1143 = vcombine.low %v1087, %v1119
        %v1144 = vcombine.high %v1087, %v1119
        %v1145 = vcombine.low %v1094, %v1126
        %v1146 = vcombine.high %v1094, %v1126
        %v1147 = vcombine.low %v1103, %v1135
        %v1148 = vcombine.high %v1103, %v1135
        %v1149 = vcombine.low %v1110, %v1142
        %v1150 = vcombine.high %v1110, %v1142
        %1167 = vrot.lane.b32.xlu0 %v1007, 120
        %v1168 = vpop.permute.xlu0 %1167
        %1169 = vrot.lane.b32.xlu0 %v1008, 120
        %v1170 = vpop.permute.xlu0 %1169
        %1171 = vrot.lane.b32.xlu0 %v1009, 120
        %v1172 = vpop.permute.xlu0 %1171
        %1173 = vrot.lane.b32.xlu0 %v1010, 120
        %v1174 = vpop.permute.xlu0 %1173
        %1175 = vrot.lane.b32.xlu0 %v1011, 120
        %v1176 = vpop.permute.xlu0 %1175
        %1177 = vrot.lane.b32.xlu0 %v1012, 120
        %v1178 = vpop.permute.xlu0 %1177
        %1179 = vrot.lane.b32.xlu0 %v1013, 120
        %v1180 = vpop.permute.xlu0 %1179
        %1181 = vrot.lane.b32.xlu0 %v1014, 120
        %v1182 = vpop.permute.xlu0 %1181
        %1183 = vrot.lane.b32.xlu0 %v1143, 120
        %v1184 = vpop.permute.xlu0 %1183
        %1185 = vrot.lane.b32.xlu0 %v1144, 120
        %v1186 = vpop.permute.xlu0 %1185
        %1187 = vrot.lane.b32.xlu0 %v1145, 120
        %v1188 = vpop.permute.xlu0 %1187
        %1189 = vrot.lane.b32.xlu0 %v1146, 120
        %v1190 = vpop.permute.xlu0 %1189
        %1191 = vrot.lane.b32.xlu0 %v1147, 120
        %v1192 = vpop.permute.xlu0 %1191
        %1193 = vrot.lane.b32.xlu0 %v1148, 120
        %v1194 = vpop.permute.xlu0 %1193
        %1195 = vrot.lane.b32.xlu0 %v1149, 120
        %v1196 = vpop.permute.xlu0 %1195
        %1197 = vrot.lane.b32.xlu0 %v1150, 120
        %v1198 = vpop.permute.xlu0 %1197
        %v1215 = vmax.f32 %v1007, %v1168
        %v1216 = vmax.f32 %v1008, %v1170
        %v1217 = vmax.f32 %v1009, %v1172
        %v1218 = vmax.f32 %v1010, %v1174
        %v1219 = vmax.f32 %v1011, %v1176
        %v1220 = vmax.f32 %v1012, %v1178
        %v1221 = vmax.f32 %v1013, %v1180
        %v1222 = vmax.f32 %v1014, %v1182
        %v1223 = vmax.f32 %v1143, %v1184
        %v1224 = vmax.f32 %v1144, %v1186
        %v1225 = vmax.f32 %v1145, %v1188
        %v1226 = vmax.f32 %v1146, %v1190
        %v1227 = vmax.f32 %v1147, %v1192
        %v1228 = vmax.f32 %v1148, %v1194
        %v1229 = vmax.f32 %v1149, %v1196
        %v1230 = vmax.f32 %v1150, %v1198
        %v1231 = vcombine.high %v1215, 0.0
        %v1233 = vunpack.c.l.s4 1983009808
        %v1234 = vunpack.c.0.s8 %v1233
        %v1235 = vlaneseq
        %v1236 = vshrl.u32 %v1235, 7
        %v1237 = vsub.s32 %v1234, %v1236
        %v1238 = vrot.slane %v1215, %v1237
        %v1240 = vunpack.c.l.s4 1983009808
        %v1241 = vunpack.c.0.s8 %v1240
        %v1242 = vlaneseq
        %v1243 = vshrl.u32 %v1242, 7
        %v1244 = vsub.s32 %v1241, %v1243
        %v1245 = vrot.slane %v1231, %v1244
        %v1246 = vcombine.high %v1216, 0.0
        %v1248 = vunpack.c.l.s4 1983009808
        %v1249 = vunpack.c.0.s8 %v1248
        %v1250 = vlaneseq
        %v1251 = vshrl.u32 %v1250, 7
        %v1252 = vsub.s32 %v1249, %v1251
        %v1253 = vrot.slane %v1216, %v1252
        %v1255 = vunpack.c.l.s4 1983009808
        %v1256 = vunpack.c.0.s8 %v1255
        %v1257 = vlaneseq
        %v1258 = vshrl.u32 %v1257, 7
        %v1259 = vsub.s32 %v1256, %v1258
        %v1260 = vrot.slane %v1246, %v1259
        %v1261 = vcombine.low %v1238, %v1253
        %v1262 = vcombine.high %v1238, %v1253
        %v1264 = vunpack.c.l.s4 1934713408
        %v1265 = vunpack.c.0.s8 %v1264
        %v1266 = vlaneseq
        %v1267 = vshrl.u32 %v1266, 7
        %v1268 = vsub.s32 %v1265, %v1267
        %v1269 = vrot.slane %v1261, %v1268
        %v1271 = vunpack.c.l.s4 1934713408
        %v1272 = vunpack.c.0.s8 %v1271
        %v1273 = vlaneseq
        %v1274 = vshrl.u32 %v1273, 7
        %v1275 = vsub.s32 %v1272, %v1274
        %v1276 = vrot.slane %v1262, %v1275
        %v1277 = vcombine.low %v1245, %v1260
        %v1278 = vcombine.high %v1245, %v1260
        %v1280 = vunpack.c.l.s4 1934713408
        %v1281 = vunpack.c.0.s8 %v1280
        %v1282 = vlaneseq
        %v1283 = vshrl.u32 %v1282, 7
        %v1284 = vsub.s32 %v1281, %v1283
        %v1285 = vrot.slane %v1277, %v1284
        %v1287 = vunpack.c.l.s4 1934713408
        %v1288 = vunpack.c.0.s8 %v1287
        %v1289 = vlaneseq
        %v1290 = vshrl.u32 %v1289, 7
        %v1291 = vsub.s32 %v1288, %v1290
        %v1292 = vrot.slane %v1278, %v1291
        %v1293 = vcombine.high %v1269, 0.0
        %v1294 = vcombine.high %v1276, 0.0
        %v1295 = vcombine.high %v1285, 0.0
        %v1296 = vcombine.high %v1292, 0.0
        %v1297 = vcombine.high %v1217, 0.0
        %v1299 = vunpack.c.l.s4 1983009808
        %v1300 = vunpack.c.0.s8 %v1299
        %v1301 = vlaneseq
        %v1302 = vshrl.u32 %v1301, 7
        %v1303 = vsub.s32 %v1300, %v1302
        %v1304 = vrot.slane %v1217, %v1303
        %v1306 = vunpack.c.l.s4 1983009808
        %v1307 = vunpack.c.0.s8 %v1306
        %v1308 = vlaneseq
        %v1309 = vshrl.u32 %v1308, 7
        %v1310 = vsub.s32 %v1307, %v1309
        %v1311 = vrot.slane %v1297, %v1310
        %v1312 = vcombine.high %v1218, 0.0
        %v1314 = vunpack.c.l.s4 1983009808
        %v1315 = vunpack.c.0.s8 %v1314
        %v1316 = vlaneseq
        %v1317 = vshrl.u32 %v1316, 7
        %v1318 = vsub.s32 %v1315, %v1317
        %v1319 = vrot.slane %v1218, %v1318
        %v1321 = vunpack.c.l.s4 1983009808
        %v1322 = vunpack.c.0.s8 %v1321
        %v1323 = vlaneseq
        %v1324 = vshrl.u32 %v1323, 7
        %v1325 = vsub.s32 %v1322, %v1324
        %v1326 = vrot.slane %v1312, %v1325
        %v1327 = vcombine.low %v1304, %v1319
        %v1328 = vcombine.high %v1304, %v1319
        %v1330 = vunpack.c.l.s4 1934713408
        %v1331 = vunpack.c.0.s8 %v1330
        %v1332 = vlaneseq
        %v1333 = vshrl.u32 %v1332, 7
        %v1334 = vsub.s32 %v1331, %v1333
        %v1335 = vrot.slane %v1327, %v1334
        %v1337 = vunpack.c.l.s4 1934713408
        %v1338 = vunpack.c.0.s8 %v1337
        %v1339 = vlaneseq
        %v1340 = vshrl.u32 %v1339, 7
        %v1341 = vsub.s32 %v1338, %v1340
        %v1342 = vrot.slane %v1328, %v1341
        %v1343 = vcombine.low %v1311, %v1326
        %v1344 = vcombine.high %v1311, %v1326
        %v1346 = vunpack.c.l.s4 1934713408
        %v1347 = vunpack.c.0.s8 %v1346
        %v1348 = vlaneseq
        %v1349 = vshrl.u32 %v1348, 7
        %v1350 = vsub.s32 %v1347, %v1349
        %v1351 = vrot.slane %v1343, %v1350
        %v1353 = vunpack.c.l.s4 1934713408
        %v1354 = vunpack.c.0.s8 %v1353
        %v1355 = vlaneseq
        %v1356 = vshrl.u32 %v1355, 7
        %v1357 = vsub.s32 %v1354, %v1356
        %v1358 = vrot.slane %v1344, %v1357
        %v1359 = vcombine.high %v1335, 0.0
        %v1360 = vcombine.high %v1342, 0.0
        %v1361 = vcombine.high %v1351, 0.0
        %v1362 = vcombine.high %v1358, 0.0
        %v1363 = vcombine.high %v1219, 0.0
        %v1365 = vunpack.c.l.s4 1983009808
        %v1366 = vunpack.c.0.s8 %v1365
        %v1367 = vlaneseq
        %v1368 = vshrl.u32 %v1367, 7
        %v1369 = vsub.s32 %v1366, %v1368
        %v1370 = vrot.slane %v1219, %v1369
        %v1372 = vunpack.c.l.s4 1983009808
        %v1373 = vunpack.c.0.s8 %v1372
        %v1374 = vlaneseq
        %v1375 = vshrl.u32 %v1374, 7
        %v1376 = vsub.s32 %v1373, %v1375
        %v1377 = vrot.slane %v1363, %v1376
        %v1378 = vcombine.high %v1220, 0.0
        %v1380 = vunpack.c.l.s4 1983009808
        %v1381 = vunpack.c.0.s8 %v1380
        %v1382 = vlaneseq
        %v1383 = vshrl.u32 %v1382, 7
        %v1384 = vsub.s32 %v1381, %v1383
        %v1385 = vrot.slane %v1220, %v1384
        %v1387 = vunpack.c.l.s4 1983009808
        %v1388 = vunpack.c.0.s8 %v1387
        %v1389 = vlaneseq
        %v1390 = vshrl.u32 %v1389, 7
        %v1391 = vsub.s32 %v1388, %v1390
        %v1392 = vrot.slane %v1378, %v1391
        %v1393 = vcombine.low %v1370, %v1385
        %v1394 = vcombine.high %v1370, %v1385
        %v1396 = vunpack.c.l.s4 1934713408
        %v1397 = vunpack.c.0.s8 %v1396
        %v1398 = vlaneseq
        %v1399 = vshrl.u32 %v1398, 7
        %v1400 = vsub.s32 %v1397, %v1399
        %v1401 = vrot.slane %v1393, %v1400
        %v1403 = vunpack.c.l.s4 1934713408
        %v1404 = vunpack.c.0.s8 %v1403
        %v1405 = vlaneseq
        %v1406 = vshrl.u32 %v1405, 7
        %v1407 = vsub.s32 %v1404, %v1406
        %v1408 = vrot.slane %v1394, %v1407
        %v1409 = vcombine.low %v1377, %v1392
        %v1410 = vcombine.high %v1377, %v1392
        %v1412 = vunpack.c.l.s4 1934713408
        %v1413 = vunpack.c.0.s8 %v1412
        %v1414 = vlaneseq
        %v1415 = vshrl.u32 %v1414, 7
        %v1416 = vsub.s32 %v1413, %v1415
        %v1417 = vrot.slane %v1409, %v1416
        %v1419 = vunpack.c.l.s4 1934713408
        %v1420 = vunpack.c.0.s8 %v1419
        %v1421 = vlaneseq
        %v1422 = vshrl.u32 %v1421, 7
        %v1423 = vsub.s32 %v1420, %v1422
        %v1424 = vrot.slane %v1410, %v1423
        %v1425 = vcombine.high %v1401, 0.0
        %v1426 = vcombine.high %v1408, 0.0
        %v1427 = vcombine.high %v1417, 0.0
        %v1428 = vcombine.high %v1424, 0.0
        %v1429 = vcombine.high %v1221, 0.0
        %v1431 = vunpack.c.l.s4 1983009808
        %v1432 = vunpack.c.0.s8 %v1431
        %v1433 = vlaneseq
        %v1434 = vshrl.u32 %v1433, 7
        %v1435 = vsub.s32 %v1432, %v1434
        %v1436 = vrot.slane %v1221, %v1435
        %v1438 = vunpack.c.l.s4 1983009808
        %v1439 = vunpack.c.0.s8 %v1438
        %v1440 = vlaneseq
        %v1441 = vshrl.u32 %v1440, 7
        %v1442 = vsub.s32 %v1439, %v1441
        %v1443 = vrot.slane %v1429, %v1442
        %v1444 = vcombine.high %v1222, 0.0
        %v1446 = vunpack.c.l.s4 1983009808
        %v1447 = vunpack.c.0.s8 %v1446
        %v1448 = vlaneseq
        %v1449 = vshrl.u32 %v1448, 7
        %v1450 = vsub.s32 %v1447, %v1449
        %v1451 = vrot.slane %v1222, %v1450
        %v1453 = vunpack.c.l.s4 1983009808
        %v1454 = vunpack.c.0.s8 %v1453
        %v1455 = vlaneseq
        %v1456 = vshrl.u32 %v1455, 7
        %v1457 = vsub.s32 %v1454, %v1456
        %v1458 = vrot.slane %v1444, %v1457
        %v1459 = vcombine.low %v1436, %v1451
        %v1460 = vcombine.high %v1436, %v1451
        %v1462 = vunpack.c.l.s4 1934713408
        %v1463 = vunpack.c.0.s8 %v1462
        %v1464 = vlaneseq
        %v1465 = vshrl.u32 %v1464, 7
        %v1466 = vsub.s32 %v1463, %v1465
        %v1467 = vrot.slane %v1459, %v1466
        %v1469 = vunpack.c.l.s4 1934713408
        %v1470 = vunpack.c.0.s8 %v1469
        %v1471 = vlaneseq
        %v1472 = vshrl.u32 %v1471, 7
        %v1473 = vsub.s32 %v1470, %v1472
        %v1474 = vrot.slane %v1460, %v1473
        %v1475 = vcombine.low %v1443, %v1458
        %v1476 = vcombine.high %v1443, %v1458
        %v1478 = vunpack.c.l.s4 1934713408
        %v1479 = vunpack.c.0.s8 %v1478
        %v1480 = vlaneseq
        %v1481 = vshrl.u32 %v1480, 7
        %v1482 = vsub.s32 %v1479, %v1481
        %v1483 = vrot.slane %v1475, %v1482
        %v1485 = vunpack.c.l.s4 1934713408
        %v1486 = vunpack.c.0.s8 %v1485
        %v1487 = vlaneseq
        %v1488 = vshrl.u32 %v1487, 7
        %v1489 = vsub.s32 %v1486, %v1488
        %v1490 = vrot.slane %v1476, %v1489
        %v1491 = vcombine.high %v1467, 0.0
        %v1492 = vcombine.high %v1474, 0.0
        %v1493 = vcombine.high %v1483, 0.0
        %v1494 = vcombine.high %v1490, 0.0
        %v1495 = vcombine.high %v1223, 0.0
        %v1497 = vunpack.c.l.s4 1983009808
        %v1498 = vunpack.c.0.s8 %v1497
        %v1499 = vlaneseq
        %v1500 = vshrl.u32 %v1499, 7
        %v1501 = vsub.s32 %v1498, %v1500
        %v1502 = vrot.slane %v1223, %v1501
        %v1504 = vunpack.c.l.s4 1983009808
        %v1505 = vunpack.c.0.s8 %v1504
        %v1506 = vlaneseq
        %v1507 = vshrl.u32 %v1506, 7
        %v1508 = vsub.s32 %v1505, %v1507
        %v1509 = vrot.slane %v1495, %v1508
        %v1510 = vcombine.high %v1224, 0.0
        %v1512 = vunpack.c.l.s4 1983009808
        %v1513 = vunpack.c.0.s8 %v1512
        %v1514 = vlaneseq
        %v1515 = vshrl.u32 %v1514, 7
        %v1516 = vsub.s32 %v1513, %v1515
        %v1517 = vrot.slane %v1224, %v1516
        %v1519 = vunpack.c.l.s4 1983009808
        %v1520 = vunpack.c.0.s8 %v1519
        %v1521 = vlaneseq
        %v1522 = vshrl.u32 %v1521, 7
        %v1523 = vsub.s32 %v1520, %v1522
        %v1524 = vrot.slane %v1510, %v1523
        %v1525 = vcombine.low %v1502, %v1517
        %v1526 = vcombine.high %v1502, %v1517
        %v1528 = vunpack.c.l.s4 1934713408
        %v1529 = vunpack.c.0.s8 %v1528
        %v1530 = vlaneseq
        %v1531 = vshrl.u32 %v1530, 7
        %v1532 = vsub.s32 %v1529, %v1531
        %v1533 = vrot.slane %v1525, %v1532
        %v1535 = vunpack.c.l.s4 1934713408
        %v1536 = vunpack.c.0.s8 %v1535
        %v1537 = vlaneseq
        %v1538 = vshrl.u32 %v1537, 7
        %v1539 = vsub.s32 %v1536, %v1538
        %v1540 = vrot.slane %v1526, %v1539
        %v1541 = vcombine.low %v1509, %v1524
        %v1542 = vcombine.high %v1509, %v1524
        %v1544 = vunpack.c.l.s4 1934713408
        %v1545 = vunpack.c.0.s8 %v1544
        %v1546 = vlaneseq
        %v1547 = vshrl.u32 %v1546, 7
        %v1548 = vsub.s32 %v1545, %v1547
        %v1549 = vrot.slane %v1541, %v1548
        %v1551 = vunpack.c.l.s4 1934713408
        %v1552 = vunpack.c.0.s8 %v1551
        %v1553 = vlaneseq
        %v1554 = vshrl.u32 %v1553, 7
        %v1555 = vsub.s32 %v1552, %v1554
        %v1556 = vrot.slane %v1542, %v1555
        %v1557 = vcombine.high %v1533, 0.0
        %v1558 = vcombine.high %v1540, 0.0
        %v1559 = vcombine.high %v1549, 0.0
        %v1560 = vcombine.high %v1556, 0.0
        %v1561 = vcombine.high %v1225, 0.0
        %v1563 = vunpack.c.l.s4 1983009808
        %v1564 = vunpack.c.0.s8 %v1563
        %v1565 = vlaneseq
        %v1566 = vshrl.u32 %v1565, 7
        %v1567 = vsub.s32 %v1564, %v1566
        %v1568 = vrot.slane %v1225, %v1567
        %v1570 = vunpack.c.l.s4 1983009808
        %v1571 = vunpack.c.0.s8 %v1570
        %v1572 = vlaneseq
        %v1573 = vshrl.u32 %v1572, 7
        %v1574 = vsub.s32 %v1571, %v1573
        %v1575 = vrot.slane %v1561, %v1574
        %v1576 = vcombine.high %v1226, 0.0
        %v1578 = vunpack.c.l.s4 1983009808
        %v1579 = vunpack.c.0.s8 %v1578
        %v1580 = vlaneseq
        %v1581 = vshrl.u32 %v1580, 7
        %v1582 = vsub.s32 %v1579, %v1581
        %v1583 = vrot.slane %v1226, %v1582
        %v1585 = vunpack.c.l.s4 1983009808
        %v1586 = vunpack.c.0.s8 %v1585
        %v1587 = vlaneseq
        %v1588 = vshrl.u32 %v1587, 7
        %v1589 = vsub.s32 %v1586, %v1588
        %v1590 = vrot.slane %v1576, %v1589
        %v1591 = vcombine.low %v1568, %v1583
        %v1592 = vcombine.high %v1568, %v1583
        %v1594 = vunpack.c.l.s4 1934713408
        %v1595 = vunpack.c.0.s8 %v1594
        %v1596 = vlaneseq
        %v1597 = vshrl.u32 %v1596, 7
        %v1598 = vsub.s32 %v1595, %v1597
        %v1599 = vrot.slane %v1591, %v1598
        %v1601 = vunpack.c.l.s4 1934713408
        %v1602 = vunpack.c.0.s8 %v1601
        %v1603 = vlaneseq
        %v1604 = vshrl.u32 %v1603, 7
        %v1605 = vsub.s32 %v1602, %v1604
        %v1606 = vrot.slane %v1592, %v1605
        %v1607 = vcombine.low %v1575, %v1590
        %v1608 = vcombine.high %v1575, %v1590
        %v1610 = vunpack.c.l.s4 1934713408
        %v1611 = vunpack.c.0.s8 %v1610
        %v1612 = vlaneseq
        %v1613 = vshrl.u32 %v1612, 7
        %v1614 = vsub.s32 %v1611, %v1613
        %v1615 = vrot.slane %v1607, %v1614
        %v1617 = vunpack.c.l.s4 1934713408
        %v1618 = vunpack.c.0.s8 %v1617
        %v1619 = vlaneseq
        %v1620 = vshrl.u32 %v1619, 7
        %v1621 = vsub.s32 %v1618, %v1620
        %v1622 = vrot.slane %v1608, %v1621
        %v1623 = vcombine.high %v1599, 0.0
        %v1624 = vcombine.high %v1606, 0.0
        %v1625 = vcombine.high %v1615, 0.0
        %v1626 = vcombine.high %v1622, 0.0
        %v1627 = vcombine.high %v1227, 0.0
        %v1629 = vunpack.c.l.s4 1983009808
        %v1630 = vunpack.c.0.s8 %v1629
        %v1631 = vlaneseq
        %v1632 = vshrl.u32 %v1631, 7
        %v1633 = vsub.s32 %v1630, %v1632
        %v1634 = vrot.slane %v1227, %v1633
        %v1636 = vunpack.c.l.s4 1983009808
        %v1637 = vunpack.c.0.s8 %v1636
        %v1638 = vlaneseq
        %v1639 = vshrl.u32 %v1638, 7
        %v1640 = vsub.s32 %v1637, %v1639
        %v1641 = vrot.slane %v1627, %v1640
        %v1642 = vcombine.high %v1228, 0.0
        %v1644 = vunpack.c.l.s4 1983009808
        %v1645 = vunpack.c.0.s8 %v1644
        %v1646 = vlaneseq
        %v1647 = vshrl.u32 %v1646, 7
        %v1648 = vsub.s32 %v1645, %v1647
        %v1649 = vrot.slane %v1228, %v1648
        %v1651 = vunpack.c.l.s4 1983009808
        %v1652 = vunpack.c.0.s8 %v1651
        %v1653 = vlaneseq
        %v1654 = vshrl.u32 %v1653, 7
        %v1655 = vsub.s32 %v1652, %v1654
        %v1656 = vrot.slane %v1642, %v1655
        %v1657 = vcombine.low %v1634, %v1649
        %v1658 = vcombine.high %v1634, %v1649
        %v1660 = vunpack.c.l.s4 1934713408
        %v1661 = vunpack.c.0.s8 %v1660
        %v1662 = vlaneseq
        %v1663 = vshrl.u32 %v1662, 7
        %v1664 = vsub.s32 %v1661, %v1663
        %v1665 = vrot.slane %v1657, %v1664
        %v1667 = vunpack.c.l.s4 1934713408
        %v1668 = vunpack.c.0.s8 %v1667
        %v1669 = vlaneseq
        %v1670 = vshrl.u32 %v1669, 7
        %v1671 = vsub.s32 %v1668, %v1670
        %v1672 = vrot.slane %v1658, %v1671
        %v1673 = vcombine.low %v1641, %v1656
        %v1674 = vcombine.high %v1641, %v1656
        %v1676 = vunpack.c.l.s4 1934713408
        %v1677 = vunpack.c.0.s8 %v1676
        %v1678 = vlaneseq
        %v1679 = vshrl.u32 %v1678, 7
        %v1680 = vsub.s32 %v1677, %v1679
        %v1681 = vrot.slane %v1673, %v1680
        %v1683 = vunpack.c.l.s4 1934713408
        %v1684 = vunpack.c.0.s8 %v1683
        %v1685 = vlaneseq
        %v1686 = vshrl.u32 %v1685, 7
        %v1687 = vsub.s32 %v1684, %v1686
        %v1688 = vrot.slane %v1674, %v1687
        %v1689 = vcombine.high %v1665, 0.0
        %v1690 = vcombine.high %v1672, 0.0
        %v1691 = vcombine.high %v1681, 0.0
        %v1692 = vcombine.high %v1688, 0.0
        %v1693 = vcombine.high %v1229, 0.0
        %v1695 = vunpack.c.l.s4 1983009808
        %v1696 = vunpack.c.0.s8 %v1695
        %v1697 = vlaneseq
        %v1698 = vshrl.u32 %v1697, 7
        %v1699 = vsub.s32 %v1696, %v1698
        %v1700 = vrot.slane %v1229, %v1699
        %v1702 = vunpack.c.l.s4 1983009808
        %v1703 = vunpack.c.0.s8 %v1702
        %v1704 = vlaneseq
        %v1705 = vshrl.u32 %v1704, 7
        %v1706 = vsub.s32 %v1703, %v1705
        %v1707 = vrot.slane %v1693, %v1706
        %v1708 = vcombine.high %v1230, 0.0
        %v1710 = vunpack.c.l.s4 1983009808
        %v1711 = vunpack.c.0.s8 %v1710
        %v1712 = vlaneseq
        %v1713 = vshrl.u32 %v1712, 7
        %v1714 = vsub.s32 %v1711, %v1713
        %v1715 = vrot.slane %v1230, %v1714
        %v1717 = vunpack.c.l.s4 1983009808
        %v1718 = vunpack.c.0.s8 %v1717
        %v1719 = vlaneseq
        %v1720 = vshrl.u32 %v1719, 7
        %v1721 = vsub.s32 %v1718, %v1720
        %v1722 = vrot.slane %v1708, %v1721
        %v1723 = vcombine.low %v1700, %v1715
        %v1724 = vcombine.high %v1700, %v1715
        %v1726 = vunpack.c.l.s4 1934713408
        %v1727 = vunpack.c.0.s8 %v1726
        %v1728 = vlaneseq
        %v1729 = vshrl.u32 %v1728, 7
        %v1730 = vsub.s32 %v1727, %v1729
        %v1731 = vrot.slane %v1723, %v1730
        %v1733 = vunpack.c.l.s4 1934713408
        %v1734 = vunpack.c.0.s8 %v1733
        %v1735 = vlaneseq
        %v1736 = vshrl.u32 %v1735, 7
        %v1737 = vsub.s32 %v1734, %v1736
        %v1738 = vrot.slane %v1724, %v1737
        %v1739 = vcombine.low %v1707, %v1722
        %v1740 = vcombine.high %v1707, %v1722
        %v1742 = vunpack.c.l.s4 1934713408
        %v1743 = vunpack.c.0.s8 %v1742
        %v1744 = vlaneseq
        %v1745 = vshrl.u32 %v1744, 7
        %v1746 = vsub.s32 %v1743, %v1745
        %v1747 = vrot.slane %v1739, %v1746
        %v1749 = vunpack.c.l.s4 1934713408
        %v1750 = vunpack.c.0.s8 %v1749
        %v1751 = vlaneseq
        %v1752 = vshrl.u32 %v1751, 7
        %v1753 = vsub.s32 %v1750, %v1752
        %v1754 = vrot.slane %v1740, %v1753
        %v1755 = vcombine.high %v1731, 0.0
        %v1756 = vcombine.high %v1738, 0.0
        %v1757 = vcombine.high %v1747, 0.0
        %v1758 = vcombine.high %v1754, 0.0
        %1767 = vrot.lane.b32.xlu0 %v1293, 8
        %v1768 = vpop.permute.xlu0 %1767
        %1769 = vrot.lane.b32.xlu0 %v1359, 8
        %v1770 = vpop.permute.xlu0 %1769
        %1771 = vrot.lane.b32.xlu0 %v1425, 8
        %v1772 = vpop.permute.xlu0 %1771
        %1773 = vrot.lane.b32.xlu0 %v1491, 8
        %v1774 = vpop.permute.xlu0 %1773
        %1775 = vrot.lane.b32.xlu0 %v1557, 8
        %v1776 = vpop.permute.xlu0 %1775
        %1777 = vrot.lane.b32.xlu0 %v1623, 8
        %v1778 = vpop.permute.xlu0 %1777
        %1779 = vrot.lane.b32.xlu0 %v1689, 8
        %v1780 = vpop.permute.xlu0 %1779
        %1781 = vrot.lane.b32.xlu0 %v1755, 8
        %v1782 = vpop.permute.xlu0 %1781
        %1799 = vrot.lane.b32.xlu0 %v1276, 16
        %v1800 = vpop.permute.xlu0 %1799
        %1801 = vrot.lane.b32.xlu0 %v1342, 16
        %v1802 = vpop.permute.xlu0 %1801
        %1803 = vrot.lane.b32.xlu0 %v1408, 16
        %v1804 = vpop.permute.xlu0 %1803
        %1805 = vrot.lane.b32.xlu0 %v1474, 16
        %v1806 = vpop.permute.xlu0 %1805
        %1807 = vrot.lane.b32.xlu0 %v1540, 16
        %v1808 = vpop.permute.xlu0 %1807
        %1809 = vrot.lane.b32.xlu0 %v1606, 16
        %v1810 = vpop.permute.xlu0 %1809
        %1811 = vrot.lane.b32.xlu0 %v1672, 16
        %v1812 = vpop.permute.xlu0 %1811
        %1813 = vrot.lane.b32.xlu0 %v1738, 16
        %v1814 = vpop.permute.xlu0 %1813
        %1831 = vrot.lane.b32.xlu0 %v1294, 24
        %v1832 = vpop.permute.xlu0 %1831
        %1833 = vrot.lane.b32.xlu0 %v1360, 24
        %v1834 = vpop.permute.xlu0 %1833
        %1835 = vrot.lane.b32.xlu0 %v1426, 24
        %v1836 = vpop.permute.xlu0 %1835
        %1837 = vrot.lane.b32.xlu0 %v1492, 24
        %v1838 = vpop.permute.xlu0 %1837
        %1839 = vrot.lane.b32.xlu0 %v1558, 24
        %v1840 = vpop.permute.xlu0 %1839
        %1841 = vrot.lane.b32.xlu0 %v1624, 24
        %v1842 = vpop.permute.xlu0 %1841
        %1843 = vrot.lane.b32.xlu0 %v1690, 24
        %v1844 = vpop.permute.xlu0 %1843
        %1845 = vrot.lane.b32.xlu0 %v1756, 24
        %v1846 = vpop.permute.xlu0 %1845
        %1863 = vrot.lane.b32.xlu0 %v1285, 32
        %v1864 = vpop.permute.xlu0 %1863
        %1865 = vrot.lane.b32.xlu0 %v1351, 32
        %v1866 = vpop.permute.xlu0 %1865
        %1867 = vrot.lane.b32.xlu0 %v1417, 32
        %v1868 = vpop.permute.xlu0 %1867
        %1869 = vrot.lane.b32.xlu0 %v1483, 32
        %v1870 = vpop.permute.xlu0 %1869
        %1871 = vrot.lane.b32.xlu0 %v1549, 32
        %v1872 = vpop.permute.xlu0 %1871
        %1873 = vrot.lane.b32.xlu0 %v1615, 32
        %v1874 = vpop.permute.xlu0 %1873
        %1875 = vrot.lane.b32.xlu0 %v1681, 32
        %v1876 = vpop.permute.xlu0 %1875
        %1877 = vrot.lane.b32.xlu0 %v1747, 32
        %v1878 = vpop.permute.xlu0 %1877
        %1895 = vrot.lane.b32.xlu0 %v1295, 40
        %v1896 = vpop.permute.xlu0 %1895
        %1897 = vrot.lane.b32.xlu0 %v1361, 40
        %v1898 = vpop.permute.xlu0 %1897
        %1899 = vrot.lane.b32.xlu0 %v1427, 40
        %v1900 = vpop.permute.xlu0 %1899
        %1901 = vrot.lane.b32.xlu0 %v1493, 40
        %v1902 = vpop.permute.xlu0 %1901
        %1903 = vrot.lane.b32.xlu0 %v1559, 40
        %v1904 = vpop.permute.xlu0 %1903
        %1905 = vrot.lane.b32.xlu0 %v1625, 40
        %v1906 = vpop.permute.xlu0 %1905
        %1907 = vrot.lane.b32.xlu0 %v1691, 40
        %v1908 = vpop.permute.xlu0 %1907
        %1909 = vrot.lane.b32.xlu0 %v1757, 40
        %v1910 = vpop.permute.xlu0 %1909
        %1927 = vrot.lane.b32.xlu0 %v1292, 48
        %v1928 = vpop.permute.xlu0 %1927
        %1929 = vrot.lane.b32.xlu0 %v1358, 48
        %v1930 = vpop.permute.xlu0 %1929
        %1931 = vrot.lane.b32.xlu0 %v1424, 48
        %v1932 = vpop.permute.xlu0 %1931
        %1933 = vrot.lane.b32.xlu0 %v1490, 48
        %v1934 = vpop.permute.xlu0 %1933
        %1935 = vrot.lane.b32.xlu0 %v1556, 48
        %v1936 = vpop.permute.xlu0 %1935
        %1937 = vrot.lane.b32.xlu0 %v1622, 48
        %v1938 = vpop.permute.xlu0 %1937
        %1939 = vrot.lane.b32.xlu0 %v1688, 48
        %v1940 = vpop.permute.xlu0 %1939
        %1941 = vrot.lane.b32.xlu0 %v1754, 48
        %v1942 = vpop.permute.xlu0 %1941
        %1959 = vrot.lane.b32.xlu0 %v1296, 56
        %v1960 = vpop.permute.xlu0 %1959
        %1961 = vrot.lane.b32.xlu0 %v1362, 56
        %v1962 = vpop.permute.xlu0 %1961
        %1963 = vrot.lane.b32.xlu0 %v1428, 56
        %v1964 = vpop.permute.xlu0 %1963
        %1965 = vrot.lane.b32.xlu0 %v1494, 56
        %v1966 = vpop.permute.xlu0 %1965
        %1967 = vrot.lane.b32.xlu0 %v1560, 56
        %v1968 = vpop.permute.xlu0 %1967
        %1969 = vrot.lane.b32.xlu0 %v1626, 56
        %v1970 = vpop.permute.xlu0 %1969
        %1971 = vrot.lane.b32.xlu0 %v1692, 56
        %v1972 = vpop.permute.xlu0 %1971
        %1973 = vrot.lane.b32.xlu0 %v1758, 56
        %v1974 = vpop.permute.xlu0 %1973
        %vm1983 = vcmask 64512
        %v1984 = vsel %vm1983, %v1269, %v1768
        %v1985 = vsel %vm1983, %v1335, %v1770
        %v1986 = vsel %vm1983, %v1401, %v1772
        %v1987 = vsel %vm1983, %v1467, %v1774
        %v1988 = vsel %vm1983, %v1533, %v1776
        %v1989 = vsel %vm1983, %v1599, %v1778
        %v1990 = vsel %vm1983, %v1665, %v1780
        %v1991 = vsel %vm1983, %v1731, %v1782
        %vm1992 = vcmask 130048
        %v1993 = vsel %vm1992, %v1984, %v1800
        %v1994 = vsel %vm1992, %v1985, %v1802
        %v1995 = vsel %vm1992, %v1986, %v1804
        %v1996 = vsel %vm1992, %v1987, %v1806
        %v1997 = vsel %vm1992, %v1988, %v1808
        %v1998 = vsel %vm1992, %v1989, %v1810
        %v1999 = vsel %vm1992, %v1990, %v1812
        %v2000 = vsel %vm1992, %v1991, %v1814
        %vm2001 = vcmask 195584
        %v2002 = vsel %vm2001, %v1993, %v1832
        %v2003 = vsel %vm2001, %v1994, %v1834
        %v2004 = vsel %vm2001, %v1995, %v1836
        %v2005 = vsel %vm2001, %v1996, %v1838
        %v2006 = vsel %vm2001, %v1997, %v1840
        %v2007 = vsel %vm2001, %v1998, %v1842
        %v2008 = vsel %vm2001, %v1999, %v1844
        %v2009 = vsel %vm2001, %v2000, %v1846
        %vm2010 = vcmask 261120
        %v2011 = vsel %vm2010, %v2002, %v1864
        %v2012 = vsel %vm2010, %v2003, %v1866
        %v2013 = vsel %vm2010, %v2004, %v1868
        %v2014 = vsel %vm2010, %v2005, %v1870
        %v2015 = vsel %vm2010, %v2006, %v1872
        %v2016 = vsel %vm2010, %v2007, %v1874
        %v2017 = vsel %vm2010, %v2008, %v1876
        %v2018 = vsel %vm2010, %v2009, %v1878
        %vm2019 = vcmask 326656
        %v2020 = vsel %vm2019, %v2011, %v1896
        %v2021 = vsel %vm2019, %v2012, %v1898
        %v2022 = vsel %vm2019, %v2013, %v1900
        %v2023 = vsel %vm2019, %v2014, %v1902
        %v2024 = vsel %vm2019, %v2015, %v1904
        %v2025 = vsel %vm2019, %v2016, %v1906
        %v2026 = vsel %vm2019, %v2017, %v1908
        %v2027 = vsel %vm2019, %v2018, %v1910
        %vm2028 = vcmask 392192
        %v2029 = vsel %vm2028, %v2020, %v1928
        %v2030 = vsel %vm2028, %v2021, %v1930
        %v2031 = vsel %vm2028, %v2022, %v1932
        %v2032 = vsel %vm2028, %v2023, %v1934
        %v2033 = vsel %vm2028, %v2024, %v1936
        %v2034 = vsel %vm2028, %v2025, %v1938
        %v2035 = vsel %vm2028, %v2026, %v1940
        %v2036 = vsel %vm2028, %v2027, %v1942
        %vm2037 = vcmask 457728
        %v2038 = vsel %vm2037, %v2029, %v1960
        %v2039 = vsel %vm2037, %v2030, %v1962
        %v2040 = vsel %vm2037, %v2031, %v1964
        %v2041 = vsel %vm2037, %v2032, %v1966
        %v2042 = vsel %vm2037, %v2033, %v1968
        %v2043 = vsel %vm2037, %v2034, %v1970
        %v2044 = vsel %vm2037, %v2035, %v1972
        %v2045 = vsel %vm2037, %v2036, %v1974
        %v2054 = vrot.slane %v2038, 1
        %v2055 = vrot.slane %v2039, 1
        %v2056 = vrot.slane %v2040, 1
        %v2057 = vrot.slane %v2041, 1
        %v2058 = vrot.slane %v2042, 1
        %v2059 = vrot.slane %v2043, 1
        %v2060 = vrot.slane %v2044, 1
        %v2061 = vrot.slane %v2045, 1
        %v2070 = vmax.f32 %v2038, %v2054
        %v2071 = vmax.f32 %v2039, %v2055
        %v2072 = vmax.f32 %v2040, %v2056
        %v2073 = vmax.f32 %v2041, %v2057
        %v2074 = vmax.f32 %v2042, %v2058
        %v2075 = vmax.f32 %v2043, %v2059
        %v2076 = vmax.f32 %v2044, %v2060
        %v2077 = vmax.f32 %v2045, %v2061
        %2078 = vst.msk [vmem:[#allocation3] sm:$0x1] %vm541, 0.0
        %2079 = vst.msk [vmem:[#allocation3 + $0x9] sm:$0x1] %vm541, 0.0
        %v2088 = vrot.slane %v2071, 7
        %vm2089 = vcmask 1041409
        %v2090 = vsel %vm2089, %v2088, %v2070
        %v2091 = vrot.slane %v2072, 6
        %vm2092 = vcmask 1042434
        %v2093 = vsel %vm2092, %v2091, %v2090
        %v2094 = vrot.slane %v2073, 5
        %vm2095 = vcmask 1043459
        %v2096 = vsel %vm2095, %v2094, %v2093
        %v2097 = vrot.slane %v2074, 4
        %vm2098 = vcmask 1044484
        %v2099 = vsel %vm2098, %v2097, %v2096
        %v2100 = vrot.slane %v2075, 3
        %vm2101 = vcmask 1045509
        %v2102 = vsel %vm2101, %v2100, %v2099
        %v2103 = vrot.slane %v2076, 2
        %vm2104 = vcmask 1046534
        %v2105 = vsel %vm2104, %v2103, %v2102
        %v2106 = vrot.slane %v2077, 1
        %vm2107 = vcmask 1047559
        %v2108 = vsel %vm2107, %v2106, %v2105
        %2110 = vst.msk [vmem:[#allocation3 + $0x1] sm:$0xff] %vm546, %v2108
        %v2111 = vld [vmem:[#allocation3] sm:$0xff]
        %v2112 = vld [vmem:[#allocation3 + $0x1] sm:$0xff]
        %v2113 = vld [vmem:[#allocation3 + $0x2] sm:$0xff]
        %v2114 = vld [vmem:[%s5] sm:$0xff]
        %v2115 = vld [vmem:[%s5 + $0x8] sm:$0xff]
        %v2116 = vld [vmem:[%s5 + $0x10] sm:$0xff]
        %v2117 = vld [vmem:[%s5 + $0x18] sm:$0xff]
        %v2118 = vld [vmem:[%s5 + $0x20] sm:$0xff]
        %v2119 = vld [vmem:[%s5 + $0x28] sm:$0xff]
        %v2120 = vld [vmem:[%s5 + $0x30] sm:$0xff]
        %v2121 = vld [vmem:[%s5 + $0x38] sm:$0xff]
        %v2122 = vld [vmem:[%s6] sm:$0xff]
        %v2123 = vld [vmem:[%s6 + $0x8] sm:$0xff]
        %v2124 = vld [vmem:[%s6 + $0x10] sm:$0xff]
        %v2125 = vld [vmem:[%s6 + $0x18] sm:$0xff]
        %v2126 = vld [vmem:[%s6 + $0x20] sm:$0xff]
        %v2127 = vld [vmem:[%s6 + $0x28] sm:$0xff]
        %v2128 = vld [vmem:[%s6 + $0x30] sm:$0xff]
        %v2129 = vld [vmem:[%s6 + $0x38] sm:$0xff]
        %v2131 = vsel %vm546, %v2112, 0
        %2133 = vmatprep.subr.mxu0 0.0
        %2134 = vmatpush1.msra.mxu0 %v2122
        %2135 = vmatprep.subr.mxu0 0.0
        %2136 = vmatpush1.msra.mxu0 %v2123
        %2137 = vmatprep.subr.mxu0 0.0
        %2138 = vmatpush1.msra.mxu0 %v2124
        %2139 = vmatprep.subr.mxu0 0.0
        %2140 = vmatpush1.msra.mxu0 %v2125
        %2141 = vmatprep.subr.mxu0 0.0
        %2142 = vmatpush1.msra.mxu0 %v2126
        %2143 = vmatprep.subr.mxu0 0.0
        %2144 = vmatpush1.msra.mxu0 %v2127
        %2145 = vmatprep.subr.mxu0 0.0
        %2146 = vmatpush1.msra.mxu0 %v2128
        %2147 = vmatprep.subr.mxu0 0.0
        %2148 = vmatpush1.msra.mxu0 %v2129
        %2149 = vmatprep.subr.mxu0 0.0
        %2150 = vmatpush1.msra.mxu0 0.0
        %2151 = vmatprep.subr.mxu0 0.0
        %2152 = vmatpush1.msra.mxu0 0.0
        %2153 = vmatprep.subr.mxu0 0.0
        %2154 = vmatpush1.msra.mxu0 0.0
        %2155 = vmatprep.subr.mxu0 0.0
        %2156 = vmatpush1.msra.mxu0 0.0
        %2157 = vmatprep.subr.mxu0 0.0
        %2158 = vmatpush1.msra.mxu0 0.0
        %2159 = vmatprep.subr.mxu0 0.0
        %2160 = vmatpush1.msra.mxu0 0.0
        %2161 = vmatprep.subr.mxu0 0.0
        %2162 = vmatpush1.msra.mxu0 0.0
        %2163 = vmatprep.subr.mxu0 0.0
        %2164 = vmatpush1.msra.mxu0 0.0
        %2165 = vmatprep.subr.mxu0 0.0
        %2166 = vmatpush1.msra.mxu0 0.0
        %2167 = vmatprep.subr.mxu0 0.0
        %2168 = vmatpush1.msra.mxu0 0.0
        %2169 = vmatprep.subr.mxu0 0.0
        %2170 = vmatpush1.msra.mxu0 0.0
        %2171 = vmatprep.subr.mxu0 0.0
        %2172 = vmatpush1.msra.mxu0 0.0
        %2173 = vmatprep.subr.mxu0 0.0
        %2174 = vmatpush1.msra.mxu0 0.0
        %2175 = vmatprep.subr.mxu0 0.0
        %2176 = vmatpush1.msra.mxu0 0.0
        %2177 = vmatprep.subr.mxu0 0.0
        %2178 = vmatpush1.msra.mxu0 0.0
        %2179 = vmatprep.subr.mxu0 0.0
        %2180 = vmatpush1.msra.mxu0 0.0
        %2181 = vmatprep.subr.mxu0 0.0
        %2182 = vmatpush1.msra.mxu0 0.0
        %2183 = vmatprep.subr.mxu0 0.0
        %2184 = vmatpush1.msra.mxu0 0.0
        %2185 = vmatprep.subr.mxu0 0.0
        %2186 = vmatpush1.msra.mxu0 0.0
        %2187 = vmatprep.subr.mxu0 0.0
        %2188 = vmatpush1.msra.mxu0 0.0
        %2189 = vmatprep.subr.mxu0 0.0
        %2190 = vmatpush1.msra.mxu0 0.0
        %2191 = vmatprep.subr.mxu0 0.0
        %2192 = vmatpush1.msra.mxu0 0.0
        %2193 = vmatprep.subr.mxu0 0.0
        %2194 = vmatpush1.msra.mxu0 0.0
        %2195 = vmatprep.subr.mxu0 0.0
        %2196 = vmatpush1.msra.mxu0 0.0
        %2197 = vmatprep.mubr.f32.mxu0 0.0
        %2198 = vmatmul.mubr.f32.gmra.mrb[0].mxu0 %v2131
        %v2199 = vpop.f32.mrb[0].mxu0
        %v2200 = vadd.f32 0.0, %v2199
        %v2201 = vpop.f32.mrb[0].mxu0
        %2202 = vdwg.mxu0
        %v2204 = vsel %vm546, %v2111, 0
        %2206 = vmatprep.subr.mxu0 0.0
        %2207 = vmatpush1.msra.mxu0 %v2114
        %2208 = vmatprep.subr.mxu0 0.0
        %2209 = vmatpush1.msra.mxu0 %v2115
        %2210 = vmatprep.subr.mxu0 0.0
        %2211 = vmatpush1.msra.mxu0 %v2116
        %2212 = vmatprep.subr.mxu0 0.0
        %2213 = vmatpush1.msra.mxu0 %v2117
        %2214 = vmatprep.subr.mxu0 0.0
        %2215 = vmatpush1.msra.mxu0 %v2118
        %2216 = vmatprep.subr.mxu0 0.0
        %2217 = vmatpush1.msra.mxu0 %v2119
        %2218 = vmatprep.subr.mxu0 0.0
        %2219 = vmatpush1.msra.mxu0 %v2120
        %2220 = vmatprep.subr.mxu0 0.0
        %2221 = vmatpush1.msra.mxu0 %v2121
        %2222 = vmatprep.subr.mxu0 0.0
        %2223 = vmatpush1.msra.mxu0 0.0
        %2224 = vmatprep.subr.mxu0 0.0
        %2225 = vmatpush1.msra.mxu0 0.0
        %2226 = vmatprep.subr.mxu0 0.0
        %2227 = vmatpush1.msra.mxu0 0.0
        %2228 = vmatprep.subr.mxu0 0.0
        %2229 = vmatpush1.msra.mxu0 0.0
        %2230 = vmatprep.subr.mxu0 0.0
        %2231 = vmatpush1.msra.mxu0 0.0
        %2232 = vmatprep.subr.mxu0 0.0
        %2233 = vmatpush1.msra.mxu0 0.0
        %2234 = vmatprep.subr.mxu0 0.0
        %2235 = vmatpush1.msra.mxu0 0.0
        %2236 = vmatprep.subr.mxu0 0.0
        %2237 = vmatpush1.msra.mxu0 0.0
        %2238 = vmatprep.subr.mxu0 0.0
        %2239 = vmatpush1.msra.mxu0 0.0
        %2240 = vmatprep.subr.mxu0 0.0
        %2241 = vmatpush1.msra.mxu0 0.0
        %2242 = vmatprep.subr.mxu0 0.0
        %2243 = vmatpush1.msra.mxu0 0.0
        %2244 = vmatprep.subr.mxu0 0.0
        %2245 = vmatpush1.msra.mxu0 0.0
        %2246 = vmatprep.subr.mxu0 0.0
        %2247 = vmatpush1.msra.mxu0 0.0
        %2248 = vmatprep.subr.mxu0 0.0
        %2249 = vmatpush1.msra.mxu0 0.0
        %2250 = vmatprep.subr.mxu0 0.0
        %2251 = vmatpush1.msra.mxu0 0.0
        %2252 = vmatprep.subr.mxu0 0.0
        %2253 = vmatpush1.msra.mxu0 0.0
        %2254 = vmatprep.subr.mxu0 0.0
        %2255 = vmatpush1.msra.mxu0 0.0
        %2256 = vmatprep.subr.mxu0 0.0
        %2257 = vmatpush1.msra.mxu0 0.0
        %2258 = vmatprep.subr.mxu0 0.0
        %2259 = vmatpush1.msra.mxu0 0.0
        %2260 = vmatprep.subr.mxu0 0.0
        %2261 = vmatpush1.msra.mxu0 0.0
        %2262 = vmatprep.subr.mxu0 0.0
        %2263 = vmatpush1.msra.mxu0 0.0
        %2264 = vmatprep.subr.mxu0 0.0
        %2265 = vmatpush1.msra.mxu0 0.0
        %2266 = vmatprep.subr.mxu0 0.0
        %2267 = vmatpush1.msra.mxu0 0.0
        %2268 = vmatprep.subr.mxu0 0.0
        %2269 = vmatpush1.msra.mxu0 0.0
        %2270 = vmatprep.mubr.f32.mxu0 0.0
        %2271 = vmatmul.mubr.f32.gmra.mrb[0].mxu0 %v2204
        %v2272 = vpop.f32.mrb[0].mxu0
        %v2273 = vadd.f32 %v2200, %v2272
        %v2274 = vpop.f32.mrb[0].mxu0
        %2275 = vdwg.mxu0
        %v2276 = vld [vmem:[#allocation7] sm:$0xff]
        %v2277 = vld [vmem:[#allocation7 + $0x8] sm:$0xff]
        %v2278 = vld [vmem:[#allocation7 + $0x10] sm:$0xff]
        %v2279 = vld [vmem:[#allocation7 + $0x18] sm:$0xff]
        %v2280 = vld [vmem:[#allocation7 + $0x20] sm:$0xff]
        %v2281 = vld [vmem:[#allocation7 + $0x28] sm:$0xff]
        %v2282 = vld [vmem:[#allocation7 + $0x30] sm:$0xff]
        %v2283 = vld [vmem:[#allocation7 + $0x38] sm:$0xff]
        %v2285 = vsel %vm546, %v2113, 0
        %2287 = vmatprep.subr.mxu0 0.0
        %2288 = vmatpush1.msra.mxu0 %v2276
        %2289 = vmatprep.subr.mxu0 0.0
        %2290 = vmatpush1.msra.mxu0 %v2277
        %2291 = vmatprep.subr.mxu0 0.0
        %2292 = vmatpush1.msra.mxu0 %v2278
        %2293 = vmatprep.subr.mxu0 0.0
        %2294 = vmatpush1.msra.mxu0 %v2279
        %2295 = vmatprep.subr.mxu0 0.0
        %2296 = vmatpush1.msra.mxu0 %v2280
        %2297 = vmatprep.subr.mxu0 0.0
        %2298 = vmatpush1.msra.mxu0 %v2281
        %2299 = vmatprep.subr.mxu0 0.0
        %2300 = vmatpush1.msra.mxu0 %v2282
        %2301 = vmatprep.subr.mxu0 0.0
        %2302 = vmatpush1.msra.mxu0 %v2283
        %2303 = vmatprep.subr.mxu0 0.0
        %2304 = vmatpush1.msra.mxu0 0.0
        %2305 = vmatprep.subr.mxu0 0.0
        %2306 = vmatpush1.msra.mxu0 0.0
        %2307 = vmatprep.subr.mxu0 0.0
        %2308 = vmatpush1.msra.mxu0 0.0
        %2309 = vmatprep.subr.mxu0 0.0
        %2310 = vmatpush1.msra.mxu0 0.0
        %2311 = vmatprep.subr.mxu0 0.0
        %2312 = vmatpush1.msra.mxu0 0.0
        %2313 = vmatprep.subr.mxu0 0.0
        %2314 = vmatpush1.msra.mxu0 0.0
        %2315 = vmatprep.subr.mxu0 0.0
        %2316 = vmatpush1.msra.mxu0 0.0
        %2317 = vmatprep.subr.mxu0 0.0
        %2318 = vmatpush1.msra.mxu0 0.0
        %2319 = vmatprep.subr.mxu0 0.0
        %2320 = vmatpush1.msra.mxu0 0.0
        %2321 = vmatprep.subr.mxu0 0.0
        %2322 = vmatpush1.msra.mxu0 0.0
        %2323 = vmatprep.subr.mxu0 0.0
        %2324 = vmatpush1.msra.mxu0 0.0
        %2325 = vmatprep.subr.mxu0 0.0
        %2326 = vmatpush1.msra.mxu0 0.0
        %2327 = vmatprep.subr.mxu0 0.0
        %2328 = vmatpush1.msra.mxu0 0.0
        %2329 = vmatprep.subr.mxu0 0.0
        %2330 = vmatpush1.msra.mxu0 0.0
        %2331 = vmatprep.subr.mxu0 0.0
        %2332 = vmatpush1.msra.mxu0 0.0
        %2333 = vmatprep.subr.mxu0 0.0
        %2334 = vmatpush1.msra.mxu0 0.0
        %2335 = vmatprep.subr.mxu0 0.0
        %2336 = vmatpush1.msra.mxu0 0.0
        %2337 = vmatprep.subr.mxu0 0.0
        %2338 = vmatpush1.msra.mxu0 0.0
        %2339 = vmatprep.subr.mxu0 0.0
        %2340 = vmatpush1.msra.mxu0 0.0
        %2341 = vmatprep.subr.mxu0 0.0
        %2342 = vmatpush1.msra.mxu0 0.0
        %2343 = vmatprep.subr.mxu0 0.0
        %2344 = vmatpush1.msra.mxu0 0.0
        %2345 = vmatprep.subr.mxu0 0.0
        %2346 = vmatpush1.msra.mxu0 0.0
        %2347 = vmatprep.subr.mxu0 0.0
        %2348 = vmatpush1.msra.mxu0 0.0
        %2349 = vmatprep.subr.mxu0 0.0
        %2350 = vmatpush1.msra.mxu0 0.0
        %2351 = vmatprep.mubr.f32.mxu0 0.0
        %2352 = vmatmul.mubr.f32.gmra.mrb[0].mxu0 %v2285
        %v2353 = vpop.f32.mrb[0].mxu0
        %v2354 = vadd.f32 0.0, %v2353
        %v2355 = vpop.f32.mrb[0].mxu0
        %2356 = vdwg.mxu0
        %v2357 = vadd.f32 %v2273, %v2354
        %v2358 = vld [vmem:[%s8] sm:$0x1]
        %v2360 = vlaneseq
        %v2361 = vshrl.u32 %v2360, 7
        %v2362 = vsub.s32 0, %v2361
        %v2363 = vrot.slane %v2358, %v2362
        %v2365 = vadd.f32 %v2357, %v2363
        %v2366 = vmax.f32 %v2365, 0.0
        %2368 = vrot.lane.b32.xlu0 %v2366, 96
        %v2369 = vpop.permute.xlu0 %2368
        %2371 = vrot.lane.b32.xlu0 %v2366, 64
        %v2372 = vpop.permute.xlu0 %2371
        %2374 = vrot.lane.b32.xlu0 %v2366, 32
        %v2375 = vpop.permute.xlu0 %2374
        %v2377 = vcombine.low %v2366, %v2372
        %v2378 = vcombine.high %v2366, %v2372
        %v2380 = vunpack.c.l.s4 1983009808
        %v2381 = vunpack.c.0.s8 %v2380
        %v2382 = vlaneseq
        %v2383 = vshrl.u32 %v2382, 7
        %v2384 = vsub.s32 %v2381, %v2383
        %v2385 = vrot.slane %v2377, %v2384
        %v2387 = vunpack.c.l.s4 1983009808
        %v2388 = vunpack.c.0.s8 %v2387
        %v2389 = vlaneseq
        %v2390 = vshrl.u32 %v2389, 7
        %v2391 = vsub.s32 %v2388, %v2390
        %v2392 = vrot.slane %v2378, %v2391
        %v2393 = vcombine.low %v2369, %v2375
        %v2394 = vcombine.high %v2369, %v2375
        %v2396 = vunpack.c.l.s4 1983009808
        %v2397 = vunpack.c.0.s8 %v2396
        %v2398 = vlaneseq
        %v2399 = vshrl.u32 %v2398, 7
        %v2400 = vsub.s32 %v2397, %v2399
        %v2401 = vrot.slane %v2393, %v2400
        %v2403 = vunpack.c.l.s4 1983009808
        %v2404 = vunpack.c.0.s8 %v2403
        %v2405 = vlaneseq
        %v2406 = vshrl.u32 %v2405, 7
        %v2407 = vsub.s32 %v2404, %v2406
        %v2408 = vrot.slane %v2394, %v2407
        %v2409 = vcombine.low %v2385, %v2401
        %v2410 = vcombine.high %v2385, %v2401
        %v2412 = vunpack.c.l.s4 1934713408
        %v2413 = vunpack.c.0.s8 %v2412
        %v2414 = vlaneseq
        %v2415 = vshrl.u32 %v2414, 7
        %v2416 = vsub.s32 %v2413, %v2415
        %v2417 = vrot.slane %v2409, %v2416
        %v2419 = vunpack.c.l.s4 1934713408
        %v2420 = vunpack.c.0.s8 %v2419
        %v2421 = vlaneseq
        %v2422 = vshrl.u32 %v2421, 7
        %v2423 = vsub.s32 %v2420, %v2422
        %v2424 = vrot.slane %v2410, %v2423
        %v2425 = vcombine.low %v2392, %v2408
        %v2426 = vcombine.high %v2392, %v2408
        %v2428 = vunpack.c.l.s4 1934713408
        %v2429 = vunpack.c.0.s8 %v2428
        %v2430 = vlaneseq
        %v2431 = vshrl.u32 %v2430, 7
        %v2432 = vsub.s32 %v2429, %v2431
        %v2433 = vrot.slane %v2425, %v2432
        %v2435 = vunpack.c.l.s4 1934713408
        %v2436 = vunpack.c.0.s8 %v2435
        %v2437 = vlaneseq
        %v2438 = vshrl.u32 %v2437, 7
        %v2439 = vsub.s32 %v2436, %v2438
        %v2440 = vrot.slane %v2426, %v2439
        %v2441 = vcombine.high %v2417, 0.0
        %v2442 = vcombine.high %v2424, 0.0
        %v2443 = vcombine.high %v2433, 0.0
        %v2444 = vcombine.high %v2440, 0.0
        %2453 = vrot.lane.b32.xlu0 %v2417, 112
        %v2454 = vpop.permute.xlu0 %2453
        %2455 = vrot.lane.b32.xlu0 %v2441, 112
        %v2456 = vpop.permute.xlu0 %2455
        %2457 = vrot.lane.b32.xlu0 %v2424, 112
        %v2458 = vpop.permute.xlu0 %2457
        %2459 = vrot.lane.b32.xlu0 %v2442, 112
        %v2460 = vpop.permute.xlu0 %2459
        %2461 = vrot.lane.b32.xlu0 %v2433, 112
        %v2462 = vpop.permute.xlu0 %2461
        %2463 = vrot.lane.b32.xlu0 %v2443, 112
        %v2464 = vpop.permute.xlu0 %2463
        %2465 = vrot.lane.b32.xlu0 %v2440, 112
        %v2466 = vpop.permute.xlu0 %2465
        %2467 = vrot.lane.b32.xlu0 %v2444, 112
        %v2468 = vpop.permute.xlu0 %2467
        %v2477 = vmax.f32 %v2417, %v2454
        %v2479 = vunpack.c.l.s4 1983009808
        %v2480 = vunpack.c.0.s8 %v2479
        %v2481 = vlaneseq
        %v2482 = vshrl.u32 %v2481, 7
        %v2483 = vsub.s32 %v2480, %v2482
        %v2484 = vrot.slane %v2477, %v2483
        %v2485 = vmax.f32 %v2441, %v2456
        %v2487 = vunpack.c.l.s4 1983009808
        %v2488 = vunpack.c.0.s8 %v2487
        %v2489 = vlaneseq
        %v2490 = vshrl.u32 %v2489, 7
        %v2491 = vsub.s32 %v2488, %v2490
        %v2492 = vrot.slane %v2485, %v2491
        %v2493 = vcombine.low %v2484, %v2492
        %v2494 = vcombine.high %v2484, %v2492
        %v2496 = vunpack.c.l.s4 1934713408
        %v2497 = vunpack.c.0.s8 %v2496
        %v2498 = vlaneseq
        %v2499 = vshrl.u32 %v2498, 7
        %v2500 = vsub.s32 %v2497, %v2499
        %v2501 = vrot.slane %v2493, %v2500
        %v2503 = vunpack.c.l.s4 1934713408
        %v2504 = vunpack.c.0.s8 %v2503
        %v2505 = vlaneseq
        %v2506 = vshrl.u32 %v2505, 7
        %v2507 = vsub.s32 %v2504, %v2506
        %v2508 = vrot.slane %v2494, %v2507
        %v2509 = vcombine.high %v2501, 0.0
        %v2510 = vcombine.high %v2508, 0.0
        %v2511 = vmax.f32 %v2424, %v2458
        %v2513 = vunpack.c.l.s4 1983009808
        %v2514 = vunpack.c.0.s8 %v2513
        %v2515 = vlaneseq
        %v2516 = vshrl.u32 %v2515, 7
        %v2517 = vsub.s32 %v2514, %v2516
        %v2518 = vrot.slane %v2511, %v2517
        %v2519 = vmax.f32 %v2442, %v2460
        %v2521 = vunpack.c.l.s4 1983009808
        %v2522 = vunpack.c.0.s8 %v2521
        %v2523 = vlaneseq
        %v2524 = vshrl.u32 %v2523, 7
        %v2525 = vsub.s32 %v2522, %v2524
        %v2526 = vrot.slane %v2519, %v2525
        %v2527 = vcombine.low %v2518, %v2526
        %v2528 = vcombine.high %v2518, %v2526
        %v2530 = vunpack.c.l.s4 1934713408
        %v2531 = vunpack.c.0.s8 %v2530
        %v2532 = vlaneseq
        %v2533 = vshrl.u32 %v2532, 7
        %v2534 = vsub.s32 %v2531, %v2533
        %v2535 = vrot.slane %v2527, %v2534
        %v2537 = vunpack.c.l.s4 1934713408
        %v2538 = vunpack.c.0.s8 %v2537
        %v2539 = vlaneseq
        %v2540 = vshrl.u32 %v2539, 7
        %v2541 = vsub.s32 %v2538, %v2540
        %v2542 = vrot.slane %v2528, %v2541
        %v2543 = vcombine.high %v2535, 0.0
        %v2544 = vcombine.high %v2542, 0.0
        %v2545 = vmax.f32 %v2433, %v2462
        %v2547 = vunpack.c.l.s4 1983009808
        %v2548 = vunpack.c.0.s8 %v2547
        %v2549 = vlaneseq
        %v2550 = vshrl.u32 %v2549, 7
        %v2551 = vsub.s32 %v2548, %v2550
        %v2552 = vrot.slane %v2545, %v2551
        %v2553 = vmax.f32 %v2443, %v2464
        %v2555 = vunpack.c.l.s4 1983009808
        %v2556 = vunpack.c.0.s8 %v2555
        %v2557 = vlaneseq
        %v2558 = vshrl.u32 %v2557, 7
        %v2559 = vsub.s32 %v2556, %v2558
        %v2560 = vrot.slane %v2553, %v2559
        %v2561 = vcombine.low %v2552, %v2560
        %v2562 = vcombine.high %v2552, %v2560
        %v2564 = vunpack.c.l.s4 1934713408
        %v2565 = vunpack.c.0.s8 %v2564
        %v2566 = vlaneseq
        %v2567 = vshrl.u32 %v2566, 7
        %v2568 = vsub.s32 %v2565, %v2567
        %v2569 = vrot.slane %v2561, %v2568
        %v2571 = vunpack.c.l.s4 1934713408
        %v2572 = vunpack.c.0.s8 %v2571
        %v2573 = vlaneseq
        %v2574 = vshrl.u32 %v2573, 7
        %v2575 = vsub.s32 %v2572, %v2574
        %v2576 = vrot.slane %v2562, %v2575
        %v2577 = vcombine.high %v2569, 0.0
        %v2578 = vcombine.high %v2576, 0.0
        %v2579 = vmax.f32 %v2440, %v2466
        %v2581 = vunpack.c.l.s4 1983009808
        %v2582 = vunpack.c.0.s8 %v2581
        %v2583 = vlaneseq
        %v2584 = vshrl.u32 %v2583, 7
        %v2585 = vsub.s32 %v2582, %v2584
        %v2586 = vrot.slane %v2579, %v2585
        %v2587 = vmax.f32 %v2444, %v2468
        %v2589 = vunpack.c.l.s4 1983009808
        %v2590 = vunpack.c.0.s8 %v2589
        %v2591 = vlaneseq
        %v2592 = vshrl.u32 %v2591, 7
        %v2593 = vsub.s32 %v2590, %v2592
        %v2594 = vrot.slane %v2587, %v2593
        %v2595 = vcombine.low %v2586, %v2594
        %v2596 = vcombine.high %v2586, %v2594
        %v2598 = vunpack.c.l.s4 1934713408
        %v2599 = vunpack.c.0.s8 %v2598
        %v2600 = vlaneseq
        %v2601 = vshrl.u32 %v2600, 7
        %v2602 = vsub.s32 %v2599, %v2601
        %v2603 = vrot.slane %v2595, %v2602
        %v2605 = vunpack.c.l.s4 1934713408
        %v2606 = vunpack.c.0.s8 %v2605
        %v2607 = vlaneseq
        %v2608 = vshrl.u32 %v2607, 7
        %v2609 = vsub.s32 %v2606, %v2608
        %v2610 = vrot.slane %v2596, %v2609
        %v2611 = vcombine.high %v2603, 0.0
        %v2612 = vcombine.high %v2610, 0.0
        %2617 = vrot.lane.b32.xlu0 %v2509, 16
        %v2618 = vpop.permute.xlu0 %2617
        %2619 = vrot.lane.b32.xlu0 %v2543, 16
        %v2620 = vpop.permute.xlu0 %2619
        %2621 = vrot.lane.b32.xlu0 %v2577, 16
        %v2622 = vpop.permute.xlu0 %2621
        %2623 = vrot.lane.b32.xlu0 %v2611, 16
        %v2624 = vpop.permute.xlu0 %2623
        %2633 = vrot.lane.b32.xlu0 %v2508, 32
        %v2634 = vpop.permute.xlu0 %2633
        %2635 = vrot.lane.b32.xlu0 %v2542, 32
        %v2636 = vpop.permute.xlu0 %2635
        %2637 = vrot.lane.b32.xlu0 %v2576, 32
        %v2638 = vpop.permute.xlu0 %2637
        %2639 = vrot.lane.b32.xlu0 %v2610, 32
        %v2640 = vpop.permute.xlu0 %2639
        %2649 = vrot.lane.b32.xlu0 %v2510, 48
        %v2650 = vpop.permute.xlu0 %2649
        %2651 = vrot.lane.b32.xlu0 %v2544, 48
        %v2652 = vpop.permute.xlu0 %2651
        %2653 = vrot.lane.b32.xlu0 %v2578, 48
        %v2654 = vpop.permute.xlu0 %2653
        %2655 = vrot.lane.b32.xlu0 %v2612, 48
        %v2656 = vpop.permute.xlu0 %2655
        %v2661 = vsel %vm1992, %v2501, %v2618
        %v2662 = vsel %vm1992, %v2535, %v2620
        %v2663 = vsel %vm1992, %v2569, %v2622
        %v2664 = vsel %vm1992, %v2603, %v2624
        %v2665 = vsel %vm2010, %v2661, %v2634
        %v2666 = vsel %vm2010, %v2662, %v2636
        %v2667 = vsel %vm2010, %v2663, %v2638
        %v2668 = vsel %vm2010, %v2664, %v2640
        %v2669 = vsel %vm2028, %v2665, %v2650
        %v2670 = vsel %vm2028, %v2666, %v2652
        %v2671 = vsel %vm2028, %v2667, %v2654
        %v2672 = vsel %vm2028, %v2668, %v2656
        %v2677 = vrot.slane %v2669, 1
        %v2678 = vrot.slane %v2670, 1
        %v2679 = vrot.slane %v2671, 1
        %v2680 = vrot.slane %v2672, 1
        %v2685 = vmax.f32 %v2669, %v2677
        %v2686 = vmax.f32 %v2670, %v2678
        %v2687 = vmax.f32 %v2671, %v2679
        %v2688 = vmax.f32 %v2672, %v2680
        %v2693 = vrot.slane %v2686, 7
        %v2694 = vsel %vm2089, %v2693, %v2685
        %v2695 = vrot.slane %v2687, 6
        %v2696 = vsel %vm2092, %v2695, %v2694
        %v2697 = vrot.slane %v2688, 5
        %v2698 = vsel %vm2095, %v2697, %v2696
        %v2701 = vunpack.c.l.s4 1983009808
        %v2702 = vunpack.c.0.s8 %v2701
        %v2703 = vlaneseq
        %v2704 = vshrl.u32 %v2703, 7
        %v2705 = vsub.s32 %v2702, %v2704
        %v2706 = vrot.slane %v2698, %v2705
        %v2707 = vcombine.high %v2706, 0.0
        %v2709 = vunpack.c.l.s4 1934713408
        %v2710 = vunpack.c.0.s8 %v2709
        %v2711 = vlaneseq
        %v2712 = vshrl.u32 %v2711, 7
        %v2713 = vsub.s32 %v2710, %v2712
        %v2714 = vrot.slane %v2706, %v2713
        %v2716 = vunpack.c.l.s4 1934713408
        %v2717 = vunpack.c.0.s8 %v2716
        %v2718 = vlaneseq
        %v2719 = vshrl.u32 %v2718, 7
        %v2720 = vsub.s32 %v2717, %v2719
        %v2721 = vrot.slane %v2707, %v2720
        %v2722 = vcombine.high %v2714, 0.0
        %v2723 = vcombine.high %v2721, 0.0
        %2725 = vrot.lane.b32.xlu0 %v2722, 64
        %v2726 = vpop.permute.xlu0 %2725
        %2729 = vrot.lane.b32.xlu0 %v2723, 64
        %v2730 = vpop.permute.xlu0 %2729
        %v2732 = vsel %vm546, %v2714, %v2726
        %v2733 = vsel %vm546, %v2721, %v2730
        %v2734 = vld [vmem:[%s9] sm:$0xff]
        %v2735 = vld [vmem:[%s9 + $0x8] sm:$0xff]
        %v2736 = vld [vmem:[%s9 + $0x10] sm:$0xff]
        %v2737 = vld [vmem:[%s9 + $0x18] sm:$0xff]
        %v2738 = vld [vmem:[%s9 + $0x20] sm:$0xff]
        %v2739 = vld [vmem:[%s9 + $0x28] sm:$0xff]
        %v2740 = vld [vmem:[%s9 + $0x30] sm:$0xff]
        %v2741 = vld [vmem:[%s9 + $0x38] sm:$0xff]
        %v2742 = vld [vmem:[%s9 + $0x40] sm:$0xff]
        %v2743 = vld [vmem:[%s9 + $0x48] sm:$0xff]
        %v2744 = vld [vmem:[%s9 + $0x50] sm:$0xff]
        %v2745 = vld [vmem:[%s9 + $0x58] sm:$0xff]
        %v2746 = vld [vmem:[%s9 + $0x60] sm:$0xff]
        %v2747 = vld [vmem:[%s9 + $0x68] sm:$0xff]
        %v2748 = vld [vmem:[%s9 + $0x70] sm:$0xff]
        %v2749 = vld [vmem:[%s9 + $0x78] sm:$0xff]
        %v2750 = vld [vmem:[%s9 + $0x80] sm:$0xff]
        %v2751 = vld [vmem:[%s9 + $0x88] sm:$0xff]
        %v2752 = vld [vmem:[%s9 + $0x90] sm:$0xff]
        %v2753 = vld [vmem:[%s9 + $0x98] sm:$0xff]
        %v2754 = vld [vmem:[%s9 + $0xa0] sm:$0xff]
        %v2755 = vld [vmem:[%s9 + $0xa8] sm:$0xff]
        %v2756 = vld [vmem:[%s9 + $0xb0] sm:$0xff]
        %v2757 = vld [vmem:[%s9 + $0xb8] sm:$0xff]
        %v2758 = vld [vmem:[%s9 + $0xc0] sm:$0xff]
        %v2759 = vld [vmem:[%s9 + $0xc8] sm:$0xff]
        %v2760 = vld [vmem:[%s9 + $0xd0] sm:$0xff]
        %v2761 = vld [vmem:[%s9 + $0xd8] sm:$0xff]
        %v2762 = vld [vmem:[%s9 + $0xe0] sm:$0xff]
        %v2763 = vld [vmem:[%s9 + $0xe8] sm:$0xff]
        %v2764 = vld [vmem:[%s9 + $0xf0] sm:$0xff]
        %v2765 = vld [vmem:[%s9 + $0xf8] sm:$0xff]
        %v2766 = vld [vmem:[%s10] sm:$0x1]
        %2767 = vmatprep.subr.mxu0 0.0
        %2768 = vmatpush1.msra.mxu0 %v2734
        %2769 = vmatprep.subr.mxu0 0.0
        %2770 = vmatpush1.msra.mxu0 %v2735
        %2771 = vmatprep.subr.mxu0 0.0
        %2772 = vmatpush1.msra.mxu0 %v2736
        %2773 = vmatprep.subr.mxu0 0.0
        %2774 = vmatpush1.msra.mxu0 %v2737
        %2775 = vmatprep.subr.mxu0 0.0
        %2776 = vmatpush1.msra.mxu0 %v2738
        %2777 = vmatprep.subr.mxu0 0.0
        %2778 = vmatpush1.msra.mxu0 %v2739
        %2779 = vmatprep.subr.mxu0 0.0
        %2780 = vmatpush1.msra.mxu0 %v2740
        %2781 = vmatprep.subr.mxu0 0.0
        %2782 = vmatpush1.msra.mxu0 %v2741
        %2783 = vmatprep.subr.mxu0 0.0
        %2784 = vmatpush1.msra.mxu0 %v2742
        %2785 = vmatprep.subr.mxu0 0.0
        %2786 = vmatpush1.msra.mxu0 %v2743
        %2787 = vmatprep.subr.mxu0 0.0
        %2788 = vmatpush1.msra.mxu0 %v2744
        %2789 = vmatprep.subr.mxu0 0.0
        %2790 = vmatpush1.msra.mxu0 %v2745
        %2791 = vmatprep.subr.mxu0 0.0
        %2792 = vmatpush1.msra.mxu0 %v2746
        %2793 = vmatprep.subr.mxu0 0.0
        %2794 = vmatpush1.msra.mxu0 %v2747
        %2795 = vmatprep.subr.mxu0 0.0
        %2796 = vmatpush1.msra.mxu0 %v2748
        %2797 = vmatprep.subr.mxu0 0.0
        %2798 = vmatpush1.msra.mxu0 %v2749
        %2799 = vmatprep.subr.mxu0 0.0
        %2800 = vmatpush1.msra.mxu0 %v2750
        %2801 = vmatprep.subr.mxu0 0.0
        %2802 = vmatpush1.msra.mxu0 %v2751
        %2803 = vmatprep.subr.mxu0 0.0
        %2804 = vmatpush1.msra.mxu0 %v2752
        %2805 = vmatprep.subr.mxu0 0.0
        %2806 = vmatpush1.msra.mxu0 %v2753
        %2807 = vmatprep.subr.mxu0 0.0
        %2808 = vmatpush1.msra.mxu0 %v2754
        %2809 = vmatprep.subr.mxu0 0.0
        %2810 = vmatpush1.msra.mxu0 %v2755
        %2811 = vmatprep.subr.mxu0 0.0
        %2812 = vmatpush1.msra.mxu0 %v2756
        %2813 = vmatprep.subr.mxu0 0.0
        %2814 = vmatpush1.msra.mxu0 %v2757
        %2815 = vmatprep.subr.mxu0 0.0
        %2816 = vmatpush1.msra.mxu0 %v2758
        %2817 = vmatprep.subr.mxu0 0.0
        %2818 = vmatpush1.msra.mxu0 %v2759
        %2819 = vmatprep.subr.mxu0 0.0
        %2820 = vmatpush1.msra.mxu0 %v2760
        %2821 = vmatprep.subr.mxu0 0.0
        %2822 = vmatpush1.msra.mxu0 %v2761
        %2823 = vmatprep.subr.mxu0 0.0
        %2824 = vmatpush1.msra.mxu0 %v2762
        %2825 = vmatprep.subr.mxu0 0.0
        %2826 = vmatpush1.msra.mxu0 %v2763
        %2827 = vmatprep.subr.mxu0 0.0
        %2828 = vmatpush1.msra.mxu0 %v2764
        %2829 = vmatprep.subr.mxu0 0.0
        %2830 = vmatpush1.msra.mxu0 %v2765
        %2831 = vmatprep.mubr.f32.mxu0 %v2733
        %2832 = vmatmul.mubr.f32.gmra.mrb[0].mxu0 %v2732
        %v2833 = vpop.f32.mrb[0].mxu0
        %v2834 = vadd.f32 %v2766, %v2833
        %v2835 = vpop.f32.mrb[0].mxu0
        %2836 = vdwg.mxu0
        %v2837 = vmax.f32 %v2834, 0.0
        %v2838 = vld [vmem:[%s11] sm:$0xff]
        %v2839 = vld [vmem:[%s11 + $0x8] sm:$0xff]
        %v2840 = vld [vmem:[%s11 + $0x10] sm:$0xff]
        %v2841 = vld [vmem:[%s11 + $0x18] sm:$0xff]
        %v2842 = vld [vmem:[%s12] sm:$0x1]
        %v2844 = vsel %vm2010, %v2837, 0
        %2846 = vmatprep.subr.mxu0 0.0
        %2847 = vmatpush1.msra.mxu0 %v2838
        %2848 = vmatprep.subr.mxu0 0.0
        %2849 = vmatpush1.msra.mxu0 %v2839
        %2850 = vmatprep.subr.mxu0 0.0
        %2851 = vmatpush1.msra.mxu0 %v2840
        %2852 = vmatprep.subr.mxu0 0.0
        %2853 = vmatpush1.msra.mxu0 %v2841
        %2854 = vmatprep.subr.mxu0 0.0
        %2855 = vmatpush1.msra.mxu0 0.0
        %2856 = vmatprep.subr.mxu0 0.0
        %2857 = vmatpush1.msra.mxu0 0.0
        %2858 = vmatprep.subr.mxu0 0.0
        %2859 = vmatpush1.msra.mxu0 0.0
        %2860 = vmatprep.subr.mxu0 0.0
        %2861 = vmatpush1.msra.mxu0 0.0
        %2862 = vmatprep.subr.mxu0 0.0
        %2863 = vmatpush1.msra.mxu0 0.0
        %2864 = vmatprep.subr.mxu0 0.0
        %2865 = vmatpush1.msra.mxu0 0.0
        %2866 = vmatprep.subr.mxu0 0.0
        %2867 = vmatpush1.msra.mxu0 0.0
        %2868 = vmatprep.subr.mxu0 0.0
        %2869 = vmatpush1.msra.mxu0 0.0
        %2870 = vmatprep.subr.mxu0 0.0
        %2871 = vmatpush1.msra.mxu0 0.0
        %2872 = vmatprep.subr.mxu0 0.0
        %2873 = vmatpush1.msra.mxu0 0.0
        %2874 = vmatprep.subr.mxu0 0.0
        %2875 = vmatpush1.msra.mxu0 0.0
        %2876 = vmatprep.subr.mxu0 0.0
        %2877 = vmatpush1.msra.mxu0 0.0
        %2878 = vmatprep.subr.mxu0 0.0
        %2879 = vmatpush1.msra.mxu0 0.0
        %2880 = vmatprep.subr.mxu0 0.0
        %2881 = vmatpush1.msra.mxu0 0.0
        %2882 = vmatprep.subr.mxu0 0.0
        %2883 = vmatpush1.msra.mxu0 0.0
        %2884 = vmatprep.subr.mxu0 0.0
        %2885 = vmatpush1.msra.mxu0 0.0
        %2886 = vmatprep.subr.mxu0 0.0
        %2887 = vmatpush1.msra.mxu0 0.0
        %2888 = vmatprep.subr.mxu0 0.0
        %2889 = vmatpush1.msra.mxu0 0.0
        %2890 = vmatprep.subr.mxu0 0.0
        %2891 = vmatpush1.msra.mxu0 0.0
        %2892 = vmatprep.subr.mxu0 0.0
        %2893 = vmatpush1.msra.mxu0 0.0
        %2894 = vmatprep.subr.mxu0 0.0
        %2895 = vmatpush1.msra.mxu0 0.0
        %2896 = vmatprep.subr.mxu0 0.0
        %2897 = vmatpush1.msra.mxu0 0.0
        %2898 = vmatprep.subr.mxu0 0.0
        %2899 = vmatpush1.msra.mxu0 0.0
        %2900 = vmatprep.subr.mxu0 0.0
        %2901 = vmatpush1.msra.mxu0 0.0
        %2902 = vmatprep.subr.mxu0 0.0
        %2903 = vmatpush1.msra.mxu0 0.0
        %2904 = vmatprep.subr.mxu0 0.0
        %2905 = vmatpush1.msra.mxu0 0.0
        %2906 = vmatprep.subr.mxu0 0.0
        %2907 = vmatpush1.msra.mxu0 0.0
        %2908 = vmatprep.subr.mxu0 0.0
        %2909 = vmatpush1.msra.mxu0 0.0
        %2910 = vmatprep.mubr.f32.mxu0 0.0
        %2911 = vmatmul.mubr.f32.gmra.mrb[0].mxu0 %v2844
        %v2912 = vpop.f32.mrb[0].mxu0
        %v2913 = vadd.f32 %v2842, %v2912
        %v2914 = vpop.f32.mrb[0].mxu0
        %2915 = vdwg.mxu0
        %v2916 = vmax.f32 %v2913, 0.0
        %v2917 = vld [vmem:[#allocation9] sm:$0xff]
        %v2918 = vld [vmem:[#allocation9 + $0x8] sm:$0xff]
        %v2919 = vld [vmem:[#allocation9 + $0x10] sm:$0xff]
        %v2920 = vld [vmem:[#allocation9 + $0x18] sm:$0xff]
        %v2921 = vld [vmem:[%s14] sm:$0x1]
        %v2923 = vsel %vm2010, %v2916, 0
        %2925 = vmatprep.subr.mxu0 0.0
        %2926 = vmatpush1.msra.mxu0 %v2917
        %2927 = vmatprep.subr.mxu0 0.0
        %2928 = vmatpush1.msra.mxu0 %v2918
        %2929 = vmatprep.subr.mxu0 0.0
        %2930 = vmatpush1.msra.mxu0 %v2919
        %2931 = vmatprep.subr.mxu0 0.0
        %2932 = vmatpush1.msra.mxu0 %v2920
        %2933 = vmatprep.subr.mxu0 0.0
        %2934 = vmatpush1.msra.mxu0 0.0
        %2935 = vmatprep.subr.mxu0 0.0
        %2936 = vmatpush1.msra.mxu0 0.0
        %2937 = vmatprep.subr.mxu0 0.0
        %2938 = vmatpush1.msra.mxu0 0.0
        %2939 = vmatprep.subr.mxu0 0.0
        %2940 = vmatpush1.msra.mxu0 0.0
        %2941 = vmatprep.subr.mxu0 0.0
        %2942 = vmatpush1.msra.mxu0 0.0
        %2943 = vmatprep.subr.mxu0 0.0
        %2944 = vmatpush1.msra.mxu0 0.0
        %2945 = vmatprep.subr.mxu0 0.0
        %2946 = vmatpush1.msra.mxu0 0.0
        %2947 = vmatprep.subr.mxu0 0.0
        %2948 = vmatpush1.msra.mxu0 0.0
        %2949 = vmatprep.subr.mxu0 0.0
        %2950 = vmatpush1.msra.mxu0 0.0
        %2951 = vmatprep.subr.mxu0 0.0
        %2952 = vmatpush1.msra.mxu0 0.0
        %2953 = vmatprep.subr.mxu0 0.0
        %2954 = vmatpush1.msra.mxu0 0.0
        %2955 = vmatprep.subr.mxu0 0.0
        %2956 = vmatpush1.msra.mxu0 0.0
        %2957 = vmatprep.subr.mxu0 0.0
        %2958 = vmatpush1.msra.mxu0 0.0
        %2959 = vmatprep.subr.mxu0 0.0
        %2960 = vmatpush1.msra.mxu0 0.0
        %2961 = vmatprep.subr.mxu0 0.0
        %2962 = vmatpush1.msra.mxu0 0.0
        %2963 = vmatprep.subr.mxu0 0.0
        %2964 = vmatpush1.msra.mxu0 0.0
        %2965 = vmatprep.subr.mxu0 0.0
        %2966 = vmatpush1.msra.mxu0 0.0
        %2967 = vmatprep.subr.mxu0 0.0
        %2968 = vmatpush1.msra.mxu0 0.0
        %2969 = vmatprep.subr.mxu0 0.0
        %2970 = vmatpush1.msra.mxu0 0.0
        %2971 = vmatprep.subr.mxu0 0.0
        %2972 = vmatpush1.msra.mxu0 0.0
        %2973 = vmatprep.subr.mxu0 0.0
        %2974 = vmatpush1.msra.mxu0 0.0
        %2975 = vmatprep.subr.mxu0 0.0
        %2976 = vmatpush1.msra.mxu0 0.0
        %2977 = vmatprep.subr.mxu0 0.0
        %2978 = vmatpush1.msra.mxu0 0.0
        %2979 = vmatprep.subr.mxu0 0.0
        %2980 = vmatpush1.msra.mxu0 0.0
        %2981 = vmatprep.subr.mxu0 0.0
        %2982 = vmatpush1.msra.mxu0 0.0
        %2983 = vmatprep.subr.mxu0 0.0
        %2984 = vmatpush1.msra.mxu0 0.0
        %2985 = vmatprep.subr.mxu0 0.0
        %2986 = vmatpush1.msra.mxu0 0.0
        %2987 = vmatprep.subr.mxu0 0.0
        %2988 = vmatpush1.msra.mxu0 0.0
        %2989 = vmatprep.mubr.f32.mxu0 0.0
        %2990 = vmatmul.mubr.f32.gmra.mrb[0].mxu0 %v2923
        %v2991 = vpop.f32.mrb[0].mxu0
        %v2992 = vadd.f32 %v2921, %v2991
        %v2993 = vpop.f32.mrb[0].mxu0
        %2994 = vdwg.mxu0
        %2995 = vst [vmem:[%s540] sm:$0x1] %v2992
        %s2996 = sand.u32 %s361, 1
        %s2997 = scalar_lea.sflag [#allocation6], %s2996
        %s2998 = sand.u32 %s361, 1
        %s2999 = scalar_lea.vmem [#allocation10], %s2998
        // Predicated region
        $region93: #{tpu_custom_call.1} parent=79 // pred_check
          %p3000 = pneg %p371
        $region94: #{tpu_custom_call.1} parent=79 // pred_check_branch
          %3002 = sbr.rel (%p3000) target = $region96
        $region95: #{tpu_custom_call.1} parent=79 // pred_region
          %s3004 = ssub.s32 16, 16
          %3005 = vsyncadd %s2997, %s3004
          %s3006 = smul.addr %s33, 16
          %s3007 = scalar_lea.hbm %s15, %s3006
          %s3009 = sshll.u32 %s2999, 4
          %s3010 = int_to_ptr.vmem [resolvable:$true] %s3009
          %3012 = dma.vmem_to_hbm [thread:$0]  %s3010, 16, %s3007, %s2997
        $region96: #{tpu_custom_call.1} parent=79 // pred_fallthru
          _
      $region80: #{tpu_custom_call.1} parent=5 // pred_fallthru
        _
      %p3013 = scmp.le.s32.totalorder 2, %s28
      // Predicated region
      $region97: #{tpu_custom_call.1} parent=5 // pred_check
        %p3014 = pneg %p3013
      $region98: #{tpu_custom_call.1} parent=5 // pred_check_branch
        %3016 = sbr.rel (%p3014) target = $region100
      $region99: #{tpu_custom_call.1} parent=5 // pred_region
        %s3017 = ssub.s32 %s28, 2
        // Predicated region
        $region101: #{tpu_custom_call.1} parent=99 // pred_check
          %p3018 = pneg %p377
        $region102: #{tpu_custom_call.1} parent=99 // pred_check_branch
          %3020 = sbr.rel (%p3018) target = $region104
        $region103: #{tpu_custom_call.1} parent=99 // pred_region
          %s3021 = sand.u32 %s362, 1
          %s3022 = scalar_lea.sflag [#allocation6], %s3021
          %s3023 = sand.u32 %s362, 1
          %s3024 = scalar_lea.vmem [#allocation10], %s3023
          %3025 = dma.done %s3022, 16
        $region104: #{tpu_custom_call.1} parent=99 // pred_fallthru
          _
      $region100: #{tpu_custom_call.1} parent=5 // pred_fallthru
        _
    $region6: #{tpu_custom_call.1} parent=1 // loop_footer
      %s32 = sadd.s32 1, %s28
    $region7: #{tpu_custom_call.1} parent=1 // loop_footer_branch
      %27 = sbr.rel target = $region3
    $region8: #{tpu_custom_call.1} parent=1 // loop_exit
      _
    %3026 = vsyncpa [#allocation5], 1
    %s3027 = scalar_lea.sflag [#allocation5], 1
    %3028 = vsyncpa %s3027, 1
    %3029 = vsyncpa [#allocation8], 1
    %3030 = vsyncpa [#allocation6], 1
    %s3031 = scalar_lea.sflag [#allocation6], 1
    %3032 = vsyncpa %s3031, 1

</llo_original>
